<compile_context>
chip_gen: v7x
topology: tpu7x:2x2x1
jax: 0.10.0
libtpu: 0.0.40
codegen_flags: <defaults>
</compile_context>

<pallas_src>
import functools

import jax
import jax.numpy as jnp
from jax.experimental import pallas as pl
from jax.experimental.pallas import tpu as pltpu


def _sce_kernel(xs_ref, w3_ref, fcw_ref, fcb_ref, out_ref, acc_ref, *,
                SH, W, compute_dtype):
    """One (batch-block b, H-strip s) grid step.

    xs_ref : (Bt, 1, M, SH+2, W+2) bf16 VMEM  halo-padded input strip
    w3_ref : (3, 3) f32            SMEM       conv3d weight (kd=1, cin=cout=1)
    fcw_ref: (SP, OUT) bf16        VMEM       fc-weight rows owned by this strip
    fcb_ref: (1, OUT) f32          VMEM       fc bias (conv bias folded in)
    out_ref: (Bt, M, OUT) f32      VMEM
    acc_ref: (Bt*M, OUT) f32       VMEM scratch, persists across the s axis
    """
    s = pl.program_id(1)
    n_s = pl.num_programs(1)

    Bt = xs_ref.shape[0]
    M = xs_ref.shape[2]
    R = Bt * M
    SH4, W4 = SH // 4, W // 4
    SP = SH4 * W4

    @pl.when(s == 0)
    def _():
        acc_ref[...] = jnp.zeros_like(acc_ref)

    slab = xs_ref[...].reshape(R, SH + 2, W + 2).astype(compute_dtype)

    # 3x3 conv (zero padding already applied in the wrapper) as 9 shifted
    # multiply-adds on the VPU.  The 3 lane-shifted (dj) views are hoisted;
    # the first tap initializes the accumulator (no zeros + extra add).
    # (If a bundle dump shows the di sublane slices materializing full-slab
    # copies, they could be moved to pltpu.roll on the sublane axis.)
    conv = None
    for dj in range(3):
        col = slab[:, :, dj:dj + W]                          # (R, SH+2, W)
        for di in range(3):
            tap = w3_ref[di, dj].astype(compute_dtype) * col[:, di:di + SH, :]
            conv = tap if conv is None else conv + tap       # (R, SH, W)

    # 4x4 max-pool, stride 4: H via a sublane-group reduce, then W via a
    # lane-group reduce.  Strip rows are contiguous in the flattened P index.
    pooled = conv.reshape(R, SH4, 4, W).max(axis=2)          # (R, SH4, W)
    pooled = pooled.reshape(R, SH4, W4, 4).max(axis=3)       # (R, SH4, W4)
    flat = pooled.reshape(R, SP).astype(jnp.bfloat16)        # row-major == .view()

    # Partial fully-connected product for this strip: bf16 x bf16 -> f32 acc.
    acc_ref[...] += jnp.dot(flat, fcw_ref[...],
                            preferred_element_type=jnp.float32)

    @pl.when(s == n_s - 1)
    def _():
        out = acc_ref[...] + fcb_ref[...]
        out_ref[...] = out.reshape(Bt, M, -1).astype(out_ref.dtype)


def sementic_context_extractor(x, conv_w, conv_b, fc_w, fc_b, *,
                               block_b=None, strip_h=None, compute_dtype=None):
    """x: (B, C=1, M, H, W) float32 (NCDHW like the PyTorch module).
    conv_w: (1, 1, 1, 3, 3), conv_b: (1,),
    fc_w: (OUT, P) PyTorch (out_features, in_features) layout, fc_b: (OUT,).
    Returns (B, M, OUT) float32.

    Numerics: input DMA is bf16, the conv runs in bf16 on v6e/v7x (f32 on
    v5e/older) and the FC matmul uses bf16 MXU operands with f32 accumulate,
    so results match the f32 PyTorch forward to roughly bf16 tolerance (~1e-2).
    """
    B, C, M, H, W = x.shape
    assert C == 1, "kernel implements the default input_channel_num=1 (kd=1)"
    assert conv_w.shape == (1, 1, 1, 3, 3) and conv_b.shape == (1,)
    assert H % 4 == 0 and W % 4 == 0
    P = (H // 4) * (W // 4)
    W4 = W // 4
    OUT = fc_w.shape[0]
    assert fc_w.shape == (OUT, P)

    # ---- per-generation knobs ---------------------------------------------
    try:
        kind = jax.devices()[0].device_kind.lower()
    except Exception:
        kind = ""
    if compute_dtype is None:
        # v6e / v7x have a bf16-capable VPU -> do the 9-tap conv in bf16 there;
        # keep f32 elementwise math on v5e and older generations.
        bf16_vpu = any(t in kind for t in ("v6", "v7", "7x"))
        compute_dtype = jnp.bfloat16 if bf16_vpu else jnp.float32
    try:
        vmem_cap = int(pltpu.get_tpu_info().vmem_capacity_bytes)
    except Exception:
        vmem_cap = 64 << 20              # conservative: v7x per-TensorCore VMEM
    budget = int(vmem_cap * 0.55)
    tmp_item = 2 if compute_dtype == jnp.bfloat16 else 4

    # ---- H-strip (reduction-axis) height ----------------------------------
    # SP = (SH//4)*(W//4) must be a sublane multiple unless the strip covers
    # the whole height (then the fcw block equals the full array).
    sh_cands = [s for s in range(4, H + 1, 4)
                if H % s == 0 and (s == H or ((s // 4) * W4) % 8 == 0)]
    if strip_h is not None:
        SH = strip_h
        assert SH in sh_cands, f"invalid strip_h={strip_h}"
    else:
        small = [s for s in sh_cands if s <= 128]
        SH = small[-1] if small else sh_cands[0]
        if SH == H:                      # keep >=2 reduction steps when possible
            multi = [s for s in sh_cands if s <= H // 2]
            if multi:
                SH = multi[-1]

    def step_bytes(bb, sh):
        r = bb * M
        sp = (sh // 4) * W4
        xin = bb * M * (sh + 2) * (W + 2) * 2           # bf16 input strip
        fcw_blk = sp * OUT * 2                          # bf16 weight strip
        outb = bb * M * OUT * 4
        acc = r * OUT * 4
        tmp = 5 * r * (sh + 2) * (W + 2) * tmp_item     # conv/pool temporaries
        return 2 * (xin + fcw_blk + outb) + acc + tmp

    # ---- batch block (parallel axis): VMEM-budget-driven -------------------
    if block_b is None:
        block_b = min(B, max(1, -(-256 // M)))          # aim for MXU-filling rows
        if B >= 2:
            block_b = min(block_b, B // 2)              # >=2 parallel steps (v7x: 2 TCs)
        while B % block_b:
            block_b -= 1
        while block_b > 1 and step_bytes(block_b, SH) > budget:
            block_b -= 1
            while B % block_b:
                block_b -= 1
    assert B % block_b == 0
    if strip_h is None:
        while step_bytes(block_b, SH) > budget:
            smaller = [s for s in sh_cands if s < SH]
            if not smaller:
                break
            SH = smaller[-1]
    grid_b = B // block_b
    grid_s = H // SH
    SP = (SH // 4) * W4

    # ---- plain-JAX glue -----------------------------------------------------
    # Squeeze the channel dim, apply the conv3d zero padding, and cut H into
    # overlapping halo strips: strip s holds padded rows [s*SH, s*SH + SH + 2).
    # The strips are stored bf16 so the dominant HBM stream is halved.
    xp = jnp.pad(x[:, 0].astype(jnp.float32),
                 ((0, 0), (0, 0), (1, 1), (1, 1)))       # (B, M, H+2, W+2)
    xstrips = jnp.stack(
        [xp[:, :, s * SH:s * SH + SH + 2, :] for s in range(grid_s)],
        axis=1).astype(jnp.bfloat16)                     # (B, grid_s, M, SH+2, W+2)

    w3 = conv_w.reshape(3, 3).astype(jnp.float32)

    # Fold the conv bias into the fc bias (exact: a uniform bias commutes with
    # max-pool and Linear is affine) so the kernel does no per-pixel bias add.
    fcw_f32 = fc_w.astype(jnp.float32)                   # (OUT, P)
    fcb = (fc_b.astype(jnp.float32)
           + conv_b.astype(jnp.float32)[0] * fcw_f32.sum(axis=1)).reshape(1, OUT)
    fcw_t = fcw_f32.T.astype(jnp.bfloat16)               # (P, OUT), streamed per strip

    vmem_limit = int(max(32 << 20,
                         min(vmem_cap - (8 << 20),
                             step_bytes(block_b, SH) + (4 << 20))))

    kernel = functools.partial(_sce_kernel, SH=SH, W=W,
                               compute_dtype=compute_dtype)
    return pl.pallas_call(
        kernel,
        out_shape=jax.ShapeDtypeStruct((B, M, OUT), jnp.float32),
        grid_spec=pltpu.PrefetchScalarGridSpec(
            num_scalar_prefetch=0,
            grid=(grid_b, grid_s),                       # reduction axis last
            in_specs=[
                pl.BlockSpec((block_b, 1, M, SH + 2, W + 2),
                             lambda b, s: (b, s, 0, 0, 0)),
                pl.BlockSpec(memory_space=pltpu.MemorySpace.SMEM),
                pl.BlockSpec((SP, OUT), lambda b, s: (s, 0)),
                pl.BlockSpec((1, OUT), lambda b, s: (0, 0)),
            ],
            out_specs=pl.BlockSpec((block_b, M, OUT), lambda b, s: (b, 0, 0)),
            scratch_shapes=[pltpu.VMEM((block_b * M, OUT), jnp.float32)],
        ),
        compiler_params=pltpu.CompilerParams(
            dimension_semantics=("parallel", "arbitrary"),
            vmem_limit_bytes=vmem_limit),
    )(xstrips, w3, fcw_t, fcb)


def _reference(x, conv_w, conv_b, fc_w, fc_b):
    """Pure-JAX f32 reference of the PyTorch forward pass."""
    B, C, M, H, W = x.shape
    xp = jnp.pad(x[:, 0], ((0, 0), (0, 0), (1, 1), (1, 1)))
    w3 = conv_w.reshape(3, 3)
    conv = jnp.zeros((B, M, H, W), jnp.float32)
    for di in range(3):
        for dj in range(3):
            conv = conv + w3[di, dj] * xp[:, :, di:di + H, dj:dj + W]
    conv = conv + conv_b[0]
    pooled = conv.reshape(B, M, H // 4, 4, W // 4, 4).max(axis=(3, 5))
    flat = pooled.reshape(B, M, -1)
    return jnp.dot(flat, fc_w.T, precision=jax.lax.Precision.HIGHEST) + fc_b


if __name__ == "__main__":
    B, C, M, H, W = 2, 1, 4, 32, 32
    OUT = 512
    P = (H // 4) * (W // 4)

    key = jax.random.PRNGKey(0)
    k1, k2, k3, k4, k5 = jax.random.split(key, 5)
    x = jax.random.normal(k1, (B, C, M, H, W), jnp.float32)
    conv_w = jax.random.normal(k2, (1, 1, 1, 3, 3), jnp.float32) * 0.1
    conv_b = jax.random.normal(k3, (1,), jnp.float32) * 0.1
    fc_w = jax.random.normal(k4, (OUT, P), jnp.float32) * 0.1
    fc_b = jax.random.normal(k5, (OUT,), jnp.float32) * 0.1

    out = sementic_context_extractor(x, conv_w, conv_b, fc_w, fc_b)
    out = jax.block_until_ready(out)

    ref = _reference(x, conv_w, conv_b, fc_w, fc_b)
    assert out.shape == (B, M, OUT), out.shape
    # bf16 input DMA + bf16 MXU (and bf16 VPU conv on v6e/v7x) -> compare
    # against the f32 reference at bf16 tolerance.
    err = float(jnp.max(jnp.abs(out - ref)))
    assert jnp.allclose(out, ref, atol=2e-2, rtol=2e-2), err
    print("KERNEL_OK")
</pallas_src>

<mosaic_0001>
module attributes {stable_mosaic.version = 11 : i64} {
  func.func @_sce_kernel(%arg0: i32, %arg1: i32, %arg2: memref<1x1x4x18x34xbf16, #tpu.memory_space<vmem>>, %arg3: memref<3x3xf32, #tpu.memory_space<smem>>, %arg4: memref<32x512xbf16, #tpu.memory_space<vmem>>, %arg5: memref<1x512xf32, #tpu.memory_space<vmem>>, %arg6: memref<1x4x512xf32, #tpu.memory_space<vmem>>, %arg7: memref<4x512xf32, #tpu.memory_space<vmem>>) attributes {dimension_semantics = [#tpu.dimension_semantics<parallel>, #tpu.dimension_semantics<arbitrary>], iteration_bounds = array<i64: 2, 2>, scalar_prefetch = 0 : i64, scratch_operands = 1 : i64, tpu.core_type = #tpu.core_type<tc>, window_params = [{transform_indices = @transform_0, window_bounds = array<i64: 1, 1, 4, 18, 34>}, {transform_indices = @transform_1, window_bounds = array<i64: 3, 3>}, {transform_indices = @transform_2, window_bounds = array<i64: 32, 512>}, {pipeline_mode = #tpu.pipeline_mode<synchronous>, transform_indices = @transform_3, window_bounds = array<i64: 1, 512>}, {transform_indices = @transform_4, window_bounds = array<i64: 1, 4, 512>}]} {
    %c0_i32 = arith.constant 0 : i32
    %0 = arith.cmpi eq, %arg1, %c0_i32 : i32
    %1 = arith.extui %0 : i1 to i32
    %c0_i32_0 = arith.constant 0 : i32
    %2 = arith.cmpi ne, %1, %c0_i32_0 : i32
    scf.if %2 {
      %cst_30 = arith.constant 0.000000e+00 : f32
      %67 = vector.broadcast %cst_30 : f32 to vector<4x512xf32>
      %c0_31 = arith.constant 0 : index
      %c0_32 = arith.constant 0 : index
      %68 = vector.load %arg7[%c0_31, %c0_32] : memref<4x512xf32, #tpu.memory_space<vmem>>, vector<4x512xf32>
      tpu.vector_store %arg7[%c0_31, %c0_32], %67 {strides = array<i32>} : memref<4x512xf32, #tpu.memory_space<vmem>>, vector<4x512xf32>,
    } else {
    }
    %c0 = arith.constant 0 : index
    %c0_1 = arith.constant 0 : index
    %c0_2 = arith.constant 0 : index
    %c0_3 = arith.constant 0 : index
    %c0_4 = arith.constant 0 : index
    %3 = vector.load %arg2[%c0, %c0_1, %c0_2, %c0_3, %c0_4] : memref<1x1x4x18x34xbf16, #tpu.memory_space<vmem>>, vector<1x1x4x18x34xbf16>
    %4 = vector.shape_cast %3 : vector<1x1x4x18x34xbf16> to vector<4x18x34xbf16>
    %5 = arith.extf %4 : vector<4x18x34xbf16> to vector<4x18x34xf32>
    %6 = vector.extract_strided_slice %5 {offsets = [0, 0, 0], sizes = [4, 18, 32], strides = [1, 1, 1]} : vector<4x18x34xf32> to vector<4x18x32xf32>
    %c0_5 = arith.constant 0 : index
    %c0_6 = arith.constant 0 : index
    %7 = memref.load %arg3[%c0_5, %c0_6] : memref<3x3xf32, #tpu.memory_space<smem>>
    %8 = vector.extract_strided_slice %6 {offsets = [0, 0, 0], sizes = [4, 16, 32], strides = [1, 1, 1]} : vector<4x18x32xf32> to vector<4x16x32xf32>
    %9 = vector.broadcast %7 : f32 to vector<4x16x32xf32>
    %10 = arith.mulf %9, %8 : vector<4x16x32xf32>
    %c1 = arith.constant 1 : index
    %c0_7 = arith.constant 0 : index
    %11 = memref.load %arg3[%c1, %c0_7] : memref<3x3xf32, #tpu.memory_space<smem>>
    %12 = vector.extract_strided_slice %6 {offsets = [0, 1, 0], sizes = [4, 16, 32], strides = [1, 1, 1]} : vector<4x18x32xf32> to vector<4x16x32xf32>
    %13 = vector.broadcast %11 : f32 to vector<4x16x32xf32>
    %14 = arith.mulf %13, %12 : vector<4x16x32xf32>
    %15 = arith.addf %10, %14 : vector<4x16x32xf32>
    %c2 = arith.constant 2 : index
    %c0_8 = arith.constant 0 : index
    %16 = memref.load %arg3[%c2, %c0_8] : memref<3x3xf32, #tpu.memory_space<smem>>
    %17 = vector.extract_strided_slice %6 {offsets = [0, 2, 0], sizes = [4, 16, 32], strides = [1, 1, 1]} : vector<4x18x32xf32> to vector<4x16x32xf32>
    %18 = vector.broadcast %16 : f32 to vector<4x16x32xf32>
    %19 = arith.mulf %18, %17 : vector<4x16x32xf32>
    %20 = arith.addf %15, %19 : vector<4x16x32xf32>
    %21 = vector.extract_strided_slice %5 {offsets = [0, 0, 1], sizes = [4, 18, 32], strides = [1, 1, 1]} : vector<4x18x34xf32> to vector<4x18x32xf32>
    %c0_9 = arith.constant 0 : index
    %c1_10 = arith.constant 1 : index
    %22 = memref.load %arg3[%c0_9, %c1_10] : memref<3x3xf32, #tpu.memory_space<smem>>
    %23 = vector.extract_strided_slice %21 {offsets = [0, 0, 0], sizes = [4, 16, 32], strides = [1, 1, 1]} : vector<4x18x32xf32> to vector<4x16x32xf32>
    %24 = vector.broadcast %22 : f32 to vector<4x16x32xf32>
    %25 = arith.mulf %24, %23 : vector<4x16x32xf32>
    %26 = arith.addf %20, %25 : vector<4x16x32xf32>
    %c1_11 = arith.constant 1 : index
    %c1_12 = arith.constant 1 : index
    %27 = memref.load %arg3[%c1_11, %c1_12] : memref<3x3xf32, #tpu.memory_space<smem>>
    %28 = vector.extract_strided_slice %21 {offsets = [0, 1, 0], sizes = [4, 16, 32], strides = [1, 1, 1]} : vector<4x18x32xf32> to vector<4x16x32xf32>
    %29 = vector.broadcast %27 : f32 to vector<4x16x32xf32>
    %30 = arith.mulf %29, %28 : vector<4x16x32xf32>
    %31 = arith.addf %26, %30 : vector<4x16x32xf32>
    %c2_13 = arith.constant 2 : index
    %c1_14 = arith.constant 1 : index
    %32 = memref.load %arg3[%c2_13, %c1_14] : memref<3x3xf32, #tpu.memory_space<smem>>
    %33 = vector.extract_strided_slice %21 {offsets = [0, 2, 0], sizes = [4, 16, 32], strides = [1, 1, 1]} : vector<4x18x32xf32> to vector<4x16x32xf32>
    %34 = vector.broadcast %32 : f32 to vector<4x16x32xf32>
    %35 = arith.mulf %34, %33 : vector<4x16x32xf32>
    %36 = arith.addf %31, %35 : vector<4x16x32xf32>
    %37 = vector.extract_strided_slice %5 {offsets = [0, 0, 2], sizes = [4, 18, 32], strides = [1, 1, 1]} : vector<4x18x34xf32> to vector<4x18x32xf32>
    %c0_15 = arith.constant 0 : index
    %c2_16 = arith.constant 2 : index
    %38 = memref.load %arg3[%c0_15, %c2_16] : memref<3x3xf32, #tpu.memory_space<smem>>
    %39 = vector.extract_strided_slice %37 {offsets = [0, 0, 0], sizes = [4, 16, 32], strides = [1, 1, 1]} : vector<4x18x32xf32> to vector<4x16x32xf32>
    %40 = vector.broadcast %38 : f32 to vector<4x16x32xf32>
    %41 = arith.mulf %40, %39 : vector<4x16x32xf32>
    %42 = arith.addf %36, %41 : vector<4x16x32xf32>
    %c1_17 = arith.constant 1 : index
    %c2_18 = arith.constant 2 : index
    %43 = memref.load %arg3[%c1_17, %c2_18] : memref<3x3xf32, #tpu.memory_space<smem>>
    %44 = vector.extract_strided_slice %37 {offsets = [0, 1, 0], sizes = [4, 16, 32], strides = [1, 1, 1]} : vector<4x18x32xf32> to vector<4x16x32xf32>
    %45 = vector.broadcast %43 : f32 to vector<4x16x32xf32>
    %46 = arith.mulf %45, %44 : vector<4x16x32xf32>
    %47 = arith.addf %42, %46 : vector<4x16x32xf32>
    %c2_19 = arith.constant 2 : index
    %c2_20 = arith.constant 2 : index
    %48 = memref.load %arg3[%c2_19, %c2_20] : memref<3x3xf32, #tpu.memory_space<smem>>
    %49 = vector.extract_strided_slice %37 {offsets = [0, 2, 0], sizes = [4, 16, 32], strides = [1, 1, 1]} : vector<4x18x32xf32> to vector<4x16x32xf32>
    %50 = vector.broadcast %48 : f32 to vector<4x16x32xf32>
    %51 = arith.mulf %50, %49 : vector<4x16x32xf32>
    %52 = arith.addf %47, %51 : vector<4x16x32xf32>
    %53 = vector.shape_cast %52 : vector<4x16x32xf32> to vector<4x4x4x32xf32>
    %cst = arith.constant dense<0xFF800000> : vector<4x4x32xf32>
    %54 = vector.multi_reduction <maximumf>, %53, %cst [2] : vector<4x4x4x32xf32> to vector<4x4x32xf32>
    %55 = vector.shape_cast %54 : vector<4x4x32xf32> to vector<4x4x8x4xf32>
    %cst_21 = arith.constant dense<0xFF800000> : vector<4x4x8xf32>
    %56 = vector.multi_reduction <maximumf>, %55, %cst_21 [3] : vector<4x4x8x4xf32> to vector<4x4x8xf32>
    %57 = vector.shape_cast %56 : vector<4x4x8xf32> to vector<4x32xf32>
    %58 = arith.truncf %57 : vector<4x32xf32> to vector<4x32xbf16>
    %c0_22 = arith.constant 0 : index
    %c0_23 = arith.constant 0 : index
    %59 = vector.load %arg7[%c0_22, %c0_23] : memref<4x512xf32, #tpu.memory_space<vmem>>, vector<4x512xf32>
    %c0_24 = arith.constant 0 : index
    %c0_25 = arith.constant 0 : index
    %60 = vector.load %arg4[%c0_24, %c0_25] : memref<32x512xbf16, #tpu.memory_space<vmem>>, vector<32x512xbf16>
    %cst_26 = arith.constant dense<0.000000e+00> : vector<4x512xf32>
    %61 = tpu.matmul %58, %60, %cst_26 {dimension_numbers = #tpu.dot_dimension_numbers<[1], [0], [0], [1], [0, 0, 1, 1], [], []>} : vector<4x32xbf16>, vector<32x512xbf16>, vector<4x512xf32> -> vector<4x512xf32>
    %62 = arith.addf %59, %61 : vector<4x512xf32>
    %c0_27 = arith.constant 0 : index
    %c0_28 = arith.constant 0 : index
    %63 = vector.load %arg7[%c0_27, %c0_28] : memref<4x512xf32, #tpu.memory_space<vmem>>, vector<4x512xf32>
    tpu.vector_store %arg7[%c0_27, %c0_28], %62 {strides = array<i32>} : memref<4x512xf32, #tpu.memory_space<vmem>>, vector<4x512xf32>,
    %c1_i32 = arith.constant 1 : i32
    %64 = arith.cmpi eq, %arg1, %c1_i32 : i32
    %65 = arith.extui %64 : i1 to i32
    %c0_i32_29 = arith.constant 0 : i32
    %66 = arith.cmpi ne, %65, %c0_i32_29 : i32
    scf.if %66 {
      %c0_30 = arith.constant 0 : index
      %c0_31 = arith.constant 0 : index
      %67 = vector.load %arg7[%c0_30, %c0_31] : memref<4x512xf32, #tpu.memory_space<vmem>>, vector<4x512xf32>
      %c0_32 = arith.constant 0 : index
      %c0_33 = arith.constant 0 : index
      %68 = vector.load %arg5[%c0_32, %c0_33] : memref<1x512xf32, #tpu.memory_space<vmem>>, vector<1x512xf32>
      %69 = vector.broadcast %68 : vector<1x512xf32> to vector<4x512xf32>
      %70 = arith.addf %67, %69 : vector<4x512xf32>
      %71 = vector.shape_cast %70 : vector<4x512xf32> to vector<1x4x512xf32>
      %c0_34 = arith.constant 0 : index
      %c0_35 = arith.constant 0 : index
      %c0_36 = arith.constant 0 : index
      %72 = vector.load %arg6[%c0_34, %c0_35, %c0_36] : memref<1x4x512xf32, #tpu.memory_space<vmem>>, vector<1x4x512xf32>
      tpu.vector_store %arg6[%c0_34, %c0_35, %c0_36], %71 {strides = array<i32>} : memref<1x4x512xf32, #tpu.memory_space<vmem>>, vector<1x4x512xf32>,
    } else {
    }
    return
  }
  func.func @transform_0(%arg0: i32, %arg1: i32) -> (i32, i32, i32, i32, i32) {
    %c0_i32 = arith.constant 0 : i32
    %c0_i32_0 = arith.constant 0 : i32
    %c0_i32_1 = arith.constant 0 : i32
    %c0_i32_2 = arith.constant 0 : i32
    return %arg0, %arg1, %c0_i32, %c0_i32_0, %c0_i32_1 : i32, i32, i32, i32, i32
  }
  func.func @transform_1(%arg0: i32, %arg1: i32) -> (i32, i32) {
    %c0_i32 = arith.constant 0 : i32
    %c0_i32_0 = arith.constant 0 : i32
    %c0_i32_1 = arith.constant 0 : i32
    return %c0_i32, %c0_i32_0 : i32, i32
  }
  func.func @transform_2(%arg0: i32, %arg1: i32) -> (i32, i32) {
    %c0_i32 = arith.constant 0 : i32
    %c0_i32_0 = arith.constant 0 : i32
    return %arg1, %c0_i32 : i32, i32
  }
  func.func @transform_3(%arg0: i32, %arg1: i32) -> (i32, i32) {
    %c0_i32 = arith.constant 0 : i32
    %c0_i32_0 = arith.constant 0 : i32
    %c0_i32_1 = arith.constant 0 : i32
    return %c0_i32, %c0_i32_0 : i32, i32
  }
  func.func @transform_4(%arg0: i32, %arg1: i32) -> (i32, i32, i32) {
    %c0_i32 = arith.constant 0 : i32
    %c0_i32_0 = arith.constant 0 : i32
    %c0_i32_1 = arith.constant 0 : i32
    return %arg0, %c0_i32, %c0_i32_0 : i32, i32, i32
  }
}

</mosaic_0001>

<llo_original>
// kernel: tpu_custom_call.1
$region0: #{tpu_custom_call.1}
  #allocation0 [shape = 'u32[]', space=smem, size = 0x4, offset = 0x4, fixed_abs, tag = 'smem constant byte address 0x4 - core index']
  #allocation1 [shape = 'u32[144,128]{1,0:T(1,128)}', space=vmem, size = 0x12000, scoped, tag = 'internal scratch']
  #allocation2 [shape = 'f32[4,512]{1,0:T(4,128)}', space=vmem, size = 0x2000, scoped, tag = 'scratch operand']
  %s0 = inlined_call_operand.vmem [shape: bf16[2,2,4,18,34], index: 0, kind: input, shape index: {}]
  %s1 = inlined_call_operand.vmem [shape: f32[3,3], index: 1, kind: input, shape index: {}]
  %s2 = inlined_call_operand.vmem [shape: bf16[64,512], index: 2, kind: input, shape index: {}]
  %s3 = inlined_call_operand.vmem [shape: f32[1,512], index: 3, kind: input, shape index: {}]
  %s4 = inlined_call_operand.hbm [shape: f32[2,4,512], index: 4, kind: output, shape index: {}]
  %s5 = sld [smem:[#allocation0]]
  $region61: #{tpu_custom_call.1} parent=0
    _
  %s7 = ssub.s32 1, %s5
  %s8 = scalar_select 0, %s7, %s5
  $region1: #{tpu_custom_call.1} parent=0
    #allocation3 [shape = 'u8[2048]{0}', space=smem, size = 0x800, scoped, tag = 'input window, operand 1, single buffered']
    #allocation4 [shape = 's32[2]{0}', space=sflag, size = 0x8, scoped, tag = 'scoped memory for tpu_custom_call.1']
    #allocation5 [shape = 's32[2]{0}', space=sflag, size = 0x8, scoped, tag = 'scoped memory for tpu_custom_call.1']
    #allocation6 [shape = 'u8[16384]{0}', space=vmem, size = 0x4000, scoped, tag = 'output window, operand 0']
    %9 = vsyncpa [#allocation5], 0
    %10 = vsyncpa [#allocation4], 0
    %s11 = scalar_lea.sflag [#allocation4], 1
    %12 = vsyncpa %s11, 0
    loop: start=0, step=1, limit=6
    $region2: #{tpu_custom_call.1} parent=1 // loop_pre_header
      _
    $region3: #{tpu_custom_call.1} parent=1 // loop_header
      %s14 = sphi 0, %s18
      %p15 = scmp.ge.s32.totalorder %s14, 6
      %s21 = sphi 0, %s33
      %s22 = sphi 0, %s29
      %s23 = sphi 0, %s21
      %s24 = sphi 0, %s22
      %s25 = sphi 0, %s23
      %s26 = sphi 0, %s24
      %s38 = sphi 0, %s40
      %s41 = sphi 0, %s38
      %s42 = sphi 0, %s41
      %s58 = sphi 0, %s42
      %s62 = sphi 0, %s62
      %s64 = sphi 0, %s62
      %s65 = sphi 0, %s64
      %s79 = sphi 0, %s65
      %s85 = sphi 0, %s87
      %s88 = sphi 0, %s85
      %s89 = sphi 0, %s88
      %s105 = sphi 0, %s89
      %s109 = sphi 0, %s109
      %s111 = sphi 0, %s109
      %s112 = sphi 0, %s111
      %s126 = sphi 0, %s112
      %s132 = sphi 0, %s134
      %s135 = sphi 0, %s132
      %s136 = sphi 0, %s135
      %s152 = sphi 0, %s136
    $region4: #{tpu_custom_call.1} parent=1 // loop_header_branch
      %17 = sbr.rel (%p15) target = $region8
    $region5: #{tpu_custom_call.1} parent=1 // loop_body
      %s19 = ssub.s32 %s14, 1
      %s20 = ssub.s32 %s14, 2
      %s27 = sadd.s32 1, %s22
      %p28 = scmp.ge.s32.totalorder %s27, 2
      %s29 = scalar_select %p28, 0, %s27
      %s30 = sadd.s32 1, %s21
      %s31 = scalar_select %p28, %s30, %s21
      %p32 = scmp.ge.s32.totalorder %s31, 2
      %s33 = scalar_select %p32, 0, %s31
      %s34 = ssub.s32 %s21, %s33
      %s35 = ssub.s32 %s22, %s29
      %s36 = sor.u32 %s34, %s35
      %p37 = scmp.eq.s32.totalorder %s36, 0
      %s39 = sadd.s32 %s38, 1
      %s40 = scalar_select %p37, %s38, %s39
      %p43 = pneg %p37
      %p44 = scmp.eq.s32.totalorder %s14, 3
      %p45 = por %p43, %p44
      %p46 = scmp.ne.s32.totalorder %s38, %s41
      %p47 = scmp.eq.s32.totalorder %s14, 0
      %p48 = por %p46, %p47
      %p49 = scmp.ne.s32.totalorder %s38, %s41
      %p50 = scmp.eq.s32.totalorder %s19, 3
      %p51 = por %p49, %p50
      %p52 = scmp.ne.s32.totalorder %s41, %s42
      %p53 = scmp.eq.s32.totalorder %s19, 0
      %p54 = por %p52, %p53
      %p55 = scmp.ne.s32.totalorder %s41, %s42
      %p56 = scmp.eq.s32.totalorder %s20, 3
      %p57 = por %p55, %p56
      %p59 = scmp.ne.s32.totalorder %s42, %s58
      %p60 = scmp.eq.s32.totalorder %s20, 0
      %p61 = por %p59, %p60
      %s63 = sadd.s32 %s62, 1
      %p66 = scmp.eq.s32.totalorder %s14, 3
      %p67 = scmp.ne.s32.totalorder %s62, %s64
      %p68 = scmp.eq.s32.totalorder %s14, 0
      %p69 = por %p67, %p68
      %p70 = scmp.ne.s32.totalorder %s62, %s64
      %p71 = scmp.eq.s32.totalorder %s19, 3
      %p72 = por %p70, %p71
      %p73 = scmp.ne.s32.totalorder %s64, %s65
      %p74 = scmp.eq.s32.totalorder %s19, 0
      %p75 = por %p73, %p74
      %p76 = scmp.ne.s32.totalorder %s64, %s65
      %p77 = scmp.eq.s32.totalorder %s20, 3
      %p78 = por %p76, %p77
      %p80 = scmp.ne.s32.totalorder %s65, %s79
      %p81 = scmp.eq.s32.totalorder %s20, 0
      %p82 = por %p80, %p81
      %s83 = ssub.s32 %s22, %s29
      %p84 = scmp.eq.s32.totalorder %s83, 0
      %s86 = sadd.s32 %s85, 1
      %s87 = scalar_select %p84, %s85, %s86
      %p90 = pneg %p84
      %p91 = scmp.eq.s32.totalorder %s14, 3
      %p92 = por %p90, %p91
      %p93 = scmp.ne.s32.totalorder %s85, %s88
      %p94 = scmp.eq.s32.totalorder %s14, 0
      %p95 = por %p93, %p94
      %p96 = scmp.ne.s32.totalorder %s85, %s88
      %p97 = scmp.eq.s32.totalorder %s19, 3
      %p98 = por %p96, %p97
      %p99 = scmp.ne.s32.totalorder %s88, %s89
      %p100 = scmp.eq.s32.totalorder %s19, 0
      %p101 = por %p99, %p100
      %p102 = scmp.ne.s32.totalorder %s88, %s89
      %p103 = scmp.eq.s32.totalorder %s20, 3
      %p104 = por %p102, %p103
      %p106 = scmp.ne.s32.totalorder %s89, %s105
      %p107 = scmp.eq.s32.totalorder %s20, 0
      %p108 = por %p106, %p107
      %s110 = sadd.s32 %s109, 1
      %p113 = scmp.eq.s32.totalorder %s14, 3
      %p114 = scmp.ne.s32.totalorder %s109, %s111
      %p115 = scmp.eq.s32.totalorder %s14, 0
      %p116 = por %p114, %p115
      %p117 = scmp.ne.s32.totalorder %s109, %s111
      %p118 = scmp.eq.s32.totalorder %s19, 3
      %p119 = por %p117, %p118
      %p120 = scmp.ne.s32.totalorder %s111, %s112
      %p121 = scmp.eq.s32.totalorder %s19, 0
      %p122 = por %p120, %p121
      %p123 = scmp.ne.s32.totalorder %s111, %s112
      %p124 = scmp.eq.s32.totalorder %s20, 3
      %p125 = por %p123, %p124
      %p127 = scmp.ne.s32.totalorder %s112, %s126
      %p128 = scmp.eq.s32.totalorder %s20, 0
      %p129 = por %p127, %p128
      %s130 = ssub.s32 %s21, %s33
      %p131 = scmp.eq.s32.totalorder %s130, 0
      %s133 = sadd.s32 %s132, 1
      %s134 = scalar_select %p131, %s132, %s133
      %p137 = pneg %p131
      %p138 = scmp.eq.s32.totalorder %s14, 3
      %p139 = por %p137, %p138
      %p140 = scmp.ne.s32.totalorder %s132, %s135
      %p141 = scmp.eq.s32.totalorder %s14, 0
      %p142 = por %p140, %p141
      %p143 = scmp.ne.s32.totalorder %s132, %s135
      %p144 = scmp.eq.s32.totalorder %s19, 3
      %p145 = por %p143, %p144
      %p146 = scmp.ne.s32.totalorder %s135, %s136
      %p147 = scmp.eq.s32.totalorder %s19, 0
      %p148 = por %p146, %p147
      %p149 = scmp.ne.s32.totalorder %s135, %s136
      %p150 = scmp.eq.s32.totalorder %s20, 3
      %p151 = por %p149, %p150
      %p153 = scmp.ne.s32.totalorder %s136, %s152
      %p154 = scmp.eq.s32.totalorder %s20, 0
      %p155 = por %p153, %p154
      %p156 = scmp.le.s32.totalorder 1, %s14
      %p157 = scmp.lt.s32.totalorder %s14, 5
      %p158 = pnand %p156, %p157
      %p159 = pneg %p158
      // Predicated region
      $region9: #{tpu_custom_call.1} parent=5 // pred_check
        _
      $region10: #{tpu_custom_call.1} parent=5 // pred_check_branch
        %161 = sbr.rel (%p158) target = $region12
      $region11: #{tpu_custom_call.1} parent=5 // pred_region
        %s162 = ssub.s32 %s14, 1
        // Predicated region
        $region13: #{tpu_custom_call.1} parent=11 // pred_check
          %p163 = pneg %p75
        $region14: #{tpu_custom_call.1} parent=11 // pred_check_branch
          %165 = sbr.rel (%p163) target = $region16
        $region15: #{tpu_custom_call.1} parent=11 // pred_region
          %s167 = ssub.s32 64, 64
          %168 = vsyncadd [#allocation5], %s167
          %s170 = sshll.u32 %s1, 4
          %s171 = int_to_ptr.vmem [resolvable:$true] %s170
          %173 = dma.vmem_to_smem %s171, 64, [#allocation3], [#allocation5]
        $region16: #{tpu_custom_call.1} parent=11 // pred_fallthru
          _
        // Predicated region
        $region17: #{tpu_custom_call.1} parent=11 // pred_check
          %p174 = pneg %p122
        $region18: #{tpu_custom_call.1} parent=11 // pred_check_branch
          %176 = sbr.rel (%p174) target = $region20
        $region19: #{tpu_custom_call.1} parent=11 // pred_region
          _
        $region20: #{tpu_custom_call.1} parent=11 // pred_fallthru
          _
      $region12: #{tpu_custom_call.1} parent=5 // pred_fallthru
        _
      %p177 = scmp.lt.s32.totalorder %s14, 4
      // Predicated region
      $region21: #{tpu_custom_call.1} parent=5 // pred_check
        %p178 = pneg %p177
      $region22: #{tpu_custom_call.1} parent=5 // pred_check_branch
        %180 = sbr.rel (%p178) target = $region24
      $region23: #{tpu_custom_call.1} parent=5 // pred_region
        // Predicated region
        $region25: #{tpu_custom_call.1} parent=23 // pred_check
          %p181 = pneg %p48
        $region26: #{tpu_custom_call.1} parent=23 // pred_check_branch
          %183 = sbr.rel (%p181) target = $region28
        $region27: #{tpu_custom_call.1} parent=23 // pred_region
          %p184 = scmp.lt.s32.totalorder %s21, 1
          %s185 = scalar_select %p184, %s21, 1
          %p186 = scmp.lt.s32.totalorder %s22, 1
          %s187 = scalar_select %p186, %s22, 1
          %s188 = smul.addr %s187, 12
          %s189 = smul.addr %s185, 24
          %s190 = sadd.s32 %s188, %s189
          %s191 = smul.addr %s190, 4
          %s192 = scalar_lea.vmem %s0, %s191
        $region28: #{tpu_custom_call.1} parent=23 // pred_fallthru
          _
        // Predicated region
        $region29: #{tpu_custom_call.1} parent=23 // pred_check
          %p193 = pneg %p95
        $region30: #{tpu_custom_call.1} parent=23 // pred_check_branch
          %195 = sbr.rel (%p193) target = $region32
        $region31: #{tpu_custom_call.1} parent=23 // pred_region
          %s196 = smul.u32 4, %s22
          %p197 = scmp.lt.s32.totalorder %s196, 7
          %s198 = scalar_select %p197, %s196, 7
          %s199 = smul.addr %s198, 4
          %s200 = smul.addr %s199, 4
          %s201 = scalar_lea.vmem %s2, %s200
          %s202 = smul.u32 4, %s22
        $region32: #{tpu_custom_call.1} parent=23 // pred_fallthru
          _
      $region24: #{tpu_custom_call.1} parent=5 // pred_fallthru
        _
      %p203 = scmp.le.s32.totalorder 1, %s14
      %p204 = scmp.lt.s32.totalorder %s14, 5
      %p205 = pnand %p203, %p204
      %p206 = pneg %p205
      // Predicated region
      $region33: #{tpu_custom_call.1} parent=5 // pred_check
        _
      $region34: #{tpu_custom_call.1} parent=5 // pred_check_branch
        %208 = sbr.rel (%p205) target = $region36
      $region35: #{tpu_custom_call.1} parent=5 // pred_region
        %s209 = ssub.s32 %s14, 1
        // Predicated region
        $region37: #{tpu_custom_call.1} parent=35 // pred_check
          %p210 = pneg %p75
        $region38: #{tpu_custom_call.1} parent=35 // pred_check_branch
          %212 = sbr.rel (%p210) target = $region40
        $region39: #{tpu_custom_call.1} parent=35 // pred_region
          %213 = dma.done [#allocation5], 64
        $region40: #{tpu_custom_call.1} parent=35 // pred_fallthru
          _
        %214 = sfence
        %p215 = scmp.lt.s32.totalorder %s23, 1
        %s216 = scalar_select %p215, %s23, 1
        %p217 = scmp.lt.s32.totalorder %s24, 1
        %s218 = scalar_select %p217, %s24, 1
        %s219 = smul.addr %s218, 12
        %s220 = smul.addr %s216, 24
        %s221 = sadd.s32 %s219, %s220
        %s222 = smul.addr %s221, 4
        %s223 = scalar_lea.vmem %s0, %s222
        %p224 = pneg %p54
        %p225 = pneg %p51
        %p226 = pneg %p75
        %p227 = pneg %p72
        %s228 = smul.u32 4, %s24
        %p229 = scmp.lt.s32.totalorder %s228, 7
        %s230 = scalar_select %p229, %s228, 7
        %s231 = smul.addr %s230, 4
        %s232 = smul.addr %s231, 4
        %s233 = scalar_lea.vmem %s2, %s232
        %p234 = pneg %p101
        %p235 = pneg %p98
        %p236 = pneg %p122
        %p237 = pneg %p119
        %p238 = pneg %p148
        %p239 = pneg %p145
        %s240 = sand.u32 %s135, 1
        %s241 = scalar_lea.sflag [#allocation4], %s240
        %s242 = sand.u32 %s135, 1
        %s243 = smul.addr %s242, 16
        %s244 = scalar_lea.vmem [#allocation6], %s243
        %p245 = scmp.lt.s32.totalorder %s23, 1
        %s246 = scalar_select %p245, %s23, 1
        %p247 = scmp.lt.s32.totalorder %s24, 1
        %s248 = scalar_select %p247, %s24, 1
        %s249 = smul.addr %s248, 12
        %s250 = smul.addr %s246, 24
        %s251 = sadd.s32 %s249, %s250
        %s252 = smul.addr %s251, 4
        %s253 = scalar_lea.vmem %s0, %s252
        %s254 = smul.u32 4, %s24
        %p255 = scmp.lt.s32.totalorder %s254, 7
        %s256 = scalar_select %p255, %s254, 7
        %s257 = smul.addr %s256, 4
        %s258 = smul.addr %s257, 4
        %s259 = scalar_lea.vmem %s2, %s258
        %s260 = smul.u32 4, %s24
        %p262 = scmp.eq.s32.totalorder %s24, 0
        // Predicated region
        $region41: #{tpu_custom_call.1} parent=35 // pred_check
          %p263 = pneg %p262
        $region42: #{tpu_custom_call.1} parent=35 // pred_check_branch
          %265 = sbr.rel (%p263) target = $region44
        $region43: #{tpu_custom_call.1} parent=35 // pred_region
          %266 = vst [vmem:[#allocation2] sm:$0xff] 0.0
          %267 = vst [vmem:[#allocation2 + $0x8] sm:$0xff] 0.0
        $region44: #{tpu_custom_call.1} parent=35 // pred_fallthru
          _
        %v268 = vld [vmem:[%s253] sm:$0xf]
        %v269 = vld [vmem:[%s253 + $0x4] sm:$0xf]
        %v270 = vld [vmem:[%s253 + $0x8] sm:$0x1]
        %v271 = vld [vmem:[%s253 + $0xc] sm:$0xf]
        %v272 = vld [vmem:[%s253 + $0x10] sm:$0xf]
        %v273 = vld [vmem:[%s253 + $0x14] sm:$0x1]
        %v274 = vld [vmem:[%s253 + $0x18] sm:$0xf]
        %v275 = vld [vmem:[%s253 + $0x1c] sm:$0xf]
        %v276 = vld [vmem:[%s253 + $0x20] sm:$0x1]
        %v277 = vld [vmem:[%s253 + $0x24] sm:$0xf]
        %v278 = vld [vmem:[%s253 + $0x28] sm:$0xf]
        %v279 = vld [vmem:[%s253 + $0x2c] sm:$0x1]
        %v280 = vunpack.c.l.bf16 %v268
        %v281 = vunpack.c.l.bf16 %v269
        %v282 = vunpack.c.l.bf16 %v270
        %v283 = vunpack.c.l.bf16 %v271
        %v284 = vunpack.c.l.bf16 %v272
        %v285 = vunpack.c.l.bf16 %v273
        %v286 = vunpack.c.l.bf16 %v274
        %v287 = vunpack.c.l.bf16 %v275
        %v288 = vunpack.c.l.bf16 %v276
        %v289 = vunpack.c.l.bf16 %v277
        %v290 = vunpack.c.l.bf16 %v278
        %v291 = vunpack.c.l.bf16 %v279
        %s292 = sld [smem:[#allocation3]]
        %v293 = vstv %s292
        %v294 = vmul.f32 %v293, %v280
        %v295 = vmul.f32 %v293, %v281
        %v296 = vmul.f32 %v293, %v283
        %v297 = vmul.f32 %v293, %v284
        %v298 = vmul.f32 %v293, %v286
        %v299 = vmul.f32 %v293, %v287
        %v300 = vmul.f32 %v293, %v289
        %v301 = vmul.f32 %v293, %v290
        %s302 = sld [smem:[#allocation3 + $0x80]]
        %v303 = vstv %s302
        %v304 = vmul.f32 %v303, %v280
        %v305 = vmul.f32 %v303, %v281
        %v306 = vmul.f32 %v303, %v282
        %v307 = vmul.f32 %v303, %v283
        %v308 = vmul.f32 %v303, %v284
        %v309 = vmul.f32 %v303, %v285
        %v310 = vmul.f32 %v303, %v286
        %v311 = vmul.f32 %v303, %v287
        %v312 = vmul.f32 %v303, %v288
        %v313 = vmul.f32 %v303, %v289
        %v314 = vmul.f32 %v303, %v290
        %v315 = vmul.f32 %v303, %v291
        %vm328 = vcmask 1046528
        %v329 = vrot.slane %v304, 1
        %v330 = vrot.slane %v305, 1
        %v331 = vsel %vm328, %v329, %v330
        %v332 = vrot.slane %v306, 1
        %v333 = vsel %vm328, %v330, %v332
        %v334 = vrot.slane %v307, 1
        %v335 = vrot.slane %v308, 1
        %v336 = vsel %vm328, %v334, %v335
        %v337 = vrot.slane %v309, 1
        %v338 = vsel %vm328, %v335, %v337
        %v339 = vrot.slane %v310, 1
        %v340 = vrot.slane %v311, 1
        %v341 = vsel %vm328, %v339, %v340
        %v342 = vrot.slane %v312, 1
        %v343 = vsel %vm328, %v340, %v342
        %v344 = vrot.slane %v313, 1
        %v345 = vrot.slane %v314, 1
        %v346 = vsel %vm328, %v344, %v345
        %v347 = vrot.slane %v315, 1
        %v348 = vsel %vm328, %v345, %v347
        %v357 = vadd.f32 %v294, %v331
        %v358 = vadd.f32 %v295, %v333
        %v359 = vadd.f32 %v296, %v336
        %v360 = vadd.f32 %v297, %v338
        %v361 = vadd.f32 %v298, %v341
        %v362 = vadd.f32 %v299, %v343
        %v363 = vadd.f32 %v300, %v346
        %v364 = vadd.f32 %v301, %v348
        %s365 = sld [smem:[#allocation3 + $0x100]]
        %v366 = vstv %s365
        %v367 = vmul.f32 %v366, %v280
        %v368 = vmul.f32 %v366, %v281
        %v369 = vmul.f32 %v366, %v282
        %v370 = vmul.f32 %v366, %v283
        %v371 = vmul.f32 %v366, %v284
        %v372 = vmul.f32 %v366, %v285
        %v373 = vmul.f32 %v366, %v286
        %v374 = vmul.f32 %v366, %v287
        %v375 = vmul.f32 %v366, %v288
        %v376 = vmul.f32 %v366, %v289
        %v377 = vmul.f32 %v366, %v290
        %v378 = vmul.f32 %v366, %v291
        %vm391 = vcmask 1045504
        %v392 = vrot.slane %v367, 2
        %v393 = vrot.slane %v368, 2
        %v394 = vsel %vm391, %v392, %v393
        %v395 = vrot.slane %v369, 2
        %v396 = vsel %vm391, %v393, %v395
        %v397 = vrot.slane %v370, 2
        %v398 = vrot.slane %v371, 2
        %v399 = vsel %vm391, %v397, %v398
        %v400 = vrot.slane %v372, 2
        %v401 = vsel %vm391, %v398, %v400
        %v402 = vrot.slane %v373, 2
        %v403 = vrot.slane %v374, 2
        %v404 = vsel %vm391, %v402, %v403
        %v405 = vrot.slane %v375, 2
        %v406 = vsel %vm391, %v403, %v405
        %v407 = vrot.slane %v376, 2
        %v408 = vrot.slane %v377, 2
        %v409 = vsel %vm391, %v407, %v408
        %v410 = vrot.slane %v378, 2
        %v411 = vsel %vm391, %v408, %v410
        %v420 = vadd.f32 %v357, %v394
        %v421 = vadd.f32 %v358, %v396
        %v422 = vadd.f32 %v359, %v399
        %v423 = vadd.f32 %v360, %v401
        %v424 = vadd.f32 %v361, %v404
        %v425 = vadd.f32 %v362, %v406
        %v426 = vadd.f32 %v363, %v409
        %v427 = vadd.f32 %v364, %v411
        %s428 = sld [smem:[#allocation3 + $0x1]]
        %v429 = vstv %s428
        %v430 = vmul.f32 %v429, %v280
        %v431 = vmul.f32 %v429, %v281
        %v432 = vmul.f32 %v429, %v283
        %v433 = vmul.f32 %v429, %v284
        %v434 = vmul.f32 %v429, %v286
        %v435 = vmul.f32 %v429, %v287
        %v436 = vmul.f32 %v429, %v289
        %v437 = vmul.f32 %v429, %v290
        %446 = vrot.lane.b32.xlu0 %v430, 127
        %v447 = vpop.permute.xlu0 %446
        %448 = vrot.lane.b32.xlu0 %v431, 127
        %v449 = vpop.permute.xlu0 %448
        %450 = vrot.lane.b32.xlu0 %v432, 127
        %v451 = vpop.permute.xlu0 %450
        %452 = vrot.lane.b32.xlu0 %v433, 127
        %v453 = vpop.permute.xlu0 %452
        %454 = vrot.lane.b32.xlu0 %v434, 127
        %v455 = vpop.permute.xlu0 %454
        %456 = vrot.lane.b32.xlu0 %v435, 127
        %v457 = vpop.permute.xlu0 %456
        %458 = vrot.lane.b32.xlu0 %v436, 127
        %v459 = vpop.permute.xlu0 %458
        %460 = vrot.lane.b32.xlu0 %v437, 127
        %v461 = vpop.permute.xlu0 %460
        %v470 = vadd.f32 %v420, %v447
        %v471 = vadd.f32 %v421, %v449
        %v472 = vadd.f32 %v422, %v451
        %v473 = vadd.f32 %v423, %v453
        %v474 = vadd.f32 %v424, %v455
        %v475 = vadd.f32 %v425, %v457
        %v476 = vadd.f32 %v426, %v459
        %v477 = vadd.f32 %v427, %v461
        %s478 = sld [smem:[#allocation3 + $0x81]]
        %v479 = vstv %s478
        %v480 = vmul.f32 %v479, %v280
        %v481 = vmul.f32 %v479, %v281
        %v482 = vmul.f32 %v479, %v282
        %v483 = vmul.f32 %v479, %v283
        %v484 = vmul.f32 %v479, %v284
        %v485 = vmul.f32 %v479, %v285
        %v486 = vmul.f32 %v479, %v286
        %v487 = vmul.f32 %v479, %v287
        %v488 = vmul.f32 %v479, %v288
        %v489 = vmul.f32 %v479, %v289
        %v490 = vmul.f32 %v479, %v290
        %v491 = vmul.f32 %v479, %v291
        %v504 = vrot.slane %v480, 1
        %v505 = vrot.slane %v481, 1
        %v506 = vsel %vm328, %v504, %v505
        %v507 = vrot.slane %v482, 1
        %v508 = vsel %vm328, %v505, %v507
        %v509 = vrot.slane %v483, 1
        %v510 = vrot.slane %v484, 1
        %v511 = vsel %vm328, %v509, %v510
        %v512 = vrot.slane %v485, 1
        %v513 = vsel %vm328, %v510, %v512
        %v514 = vrot.slane %v486, 1
        %v515 = vrot.slane %v487, 1
        %v516 = vsel %vm328, %v514, %v515
        %v517 = vrot.slane %v488, 1
        %v518 = vsel %vm328, %v515, %v517
        %v519 = vrot.slane %v489, 1
        %v520 = vrot.slane %v490, 1
        %v521 = vsel %vm328, %v519, %v520
        %v522 = vrot.slane %v491, 1
        %v523 = vsel %vm328, %v520, %v522
        %524 = vrot.lane.b32.xlu0 %v506, 127
        %v525 = vpop.permute.xlu0 %524
        %526 = vrot.lane.b32.xlu0 %v508, 127
        %v527 = vpop.permute.xlu0 %526
        %528 = vrot.lane.b32.xlu0 %v511, 127
        %v529 = vpop.permute.xlu0 %528
        %530 = vrot.lane.b32.xlu0 %v513, 127
        %v531 = vpop.permute.xlu0 %530
        %532 = vrot.lane.b32.xlu0 %v516, 127
        %v533 = vpop.permute.xlu0 %532
        %534 = vrot.lane.b32.xlu0 %v518, 127
        %v535 = vpop.permute.xlu0 %534
        %536 = vrot.lane.b32.xlu0 %v521, 127
        %v537 = vpop.permute.xlu0 %536
        %538 = vrot.lane.b32.xlu0 %v523, 127
        %v539 = vpop.permute.xlu0 %538
        %v548 = vadd.f32 %v470, %v525
        %v549 = vadd.f32 %v471, %v527
        %v550 = vadd.f32 %v472, %v529
        %v551 = vadd.f32 %v473, %v531
        %v552 = vadd.f32 %v474, %v533
        %v553 = vadd.f32 %v475, %v535
        %v554 = vadd.f32 %v476, %v537
        %v555 = vadd.f32 %v477, %v539
        %s556 = sld [smem:[#allocation3 + $0x101]]
        %v557 = vstv %s556
        %v558 = vmul.f32 %v557, %v280
        %v559 = vmul.f32 %v557, %v281
        %v560 = vmul.f32 %v557, %v282
        %v561 = vmul.f32 %v557, %v283
        %v562 = vmul.f32 %v557, %v284
        %v563 = vmul.f32 %v557, %v285
        %v564 = vmul.f32 %v557, %v286
        %v565 = vmul.f32 %v557, %v287
        %v566 = vmul.f32 %v557, %v288
        %v567 = vmul.f32 %v557, %v289
        %v568 = vmul.f32 %v557, %v290
        %v569 = vmul.f32 %v557, %v291
        %v582 = vrot.slane %v558, 2
        %v583 = vrot.slane %v559, 2
        %v584 = vsel %vm391, %v582, %v583
        %v585 = vrot.slane %v560, 2
        %v586 = vsel %vm391, %v583, %v585
        %v587 = vrot.slane %v561, 2
        %v588 = vrot.slane %v562, 2
        %v589 = vsel %vm391, %v587, %v588
        %v590 = vrot.slane %v563, 2
        %v591 = vsel %vm391, %v588, %v590
        %v592 = vrot.slane %v564, 2
        %v593 = vrot.slane %v565, 2
        %v594 = vsel %vm391, %v592, %v593
        %v595 = vrot.slane %v566, 2
        %v596 = vsel %vm391, %v593, %v595
        %v597 = vrot.slane %v567, 2
        %v598 = vrot.slane %v568, 2
        %v599 = vsel %vm391, %v597, %v598
        %v600 = vrot.slane %v569, 2
        %v601 = vsel %vm391, %v598, %v600
        %602 = vrot.lane.b32.xlu0 %v584, 127
        %v603 = vpop.permute.xlu0 %602
        %604 = vrot.lane.b32.xlu0 %v586, 127
        %v605 = vpop.permute.xlu0 %604
        %606 = vrot.lane.b32.xlu0 %v589, 127
        %v607 = vpop.permute.xlu0 %606
        %608 = vrot.lane.b32.xlu0 %v591, 127
        %v609 = vpop.permute.xlu0 %608
        %610 = vrot.lane.b32.xlu0 %v594, 127
        %v611 = vpop.permute.xlu0 %610
        %612 = vrot.lane.b32.xlu0 %v596, 127
        %v613 = vpop.permute.xlu0 %612
        %614 = vrot.lane.b32.xlu0 %v599, 127
        %v615 = vpop.permute.xlu0 %614
        %616 = vrot.lane.b32.xlu0 %v601, 127
        %v617 = vpop.permute.xlu0 %616
        %v626 = vadd.f32 %v548, %v603
        %v627 = vadd.f32 %v549, %v605
        %v628 = vadd.f32 %v550, %v607
        %v629 = vadd.f32 %v551, %v609
        %v630 = vadd.f32 %v552, %v611
        %v631 = vadd.f32 %v553, %v613
        %v632 = vadd.f32 %v554, %v615
        %v633 = vadd.f32 %v555, %v617
        %s634 = sld [smem:[#allocation3 + $0x2]]
        %v635 = vstv %s634
        %v636 = vmul.f32 %v635, %v280
        %v637 = vmul.f32 %v635, %v281
        %v638 = vmul.f32 %v635, %v283
        %v639 = vmul.f32 %v635, %v284
        %v640 = vmul.f32 %v635, %v286
        %v641 = vmul.f32 %v635, %v287
        %v642 = vmul.f32 %v635, %v289
        %v643 = vmul.f32 %v635, %v290
        %652 = vrot.lane.b32.xlu0 %v636, 126
        %v653 = vpop.permute.xlu0 %652
        %654 = vrot.lane.b32.xlu0 %v637, 126
        %v655 = vpop.permute.xlu0 %654
        %656 = vrot.lane.b32.xlu0 %v638, 126
        %v657 = vpop.permute.xlu0 %656
        %658 = vrot.lane.b32.xlu0 %v639, 126
        %v659 = vpop.permute.xlu0 %658
        %660 = vrot.lane.b32.xlu0 %v640, 126
        %v661 = vpop.permute.xlu0 %660
        %662 = vrot.lane.b32.xlu0 %v641, 126
        %v663 = vpop.permute.xlu0 %662
        %664 = vrot.lane.b32.xlu0 %v642, 126
        %v665 = vpop.permute.xlu0 %664
        %666 = vrot.lane.b32.xlu0 %v643, 126
        %v667 = vpop.permute.xlu0 %666
        %v676 = vadd.f32 %v626, %v653
        %v677 = vadd.f32 %v627, %v655
        %v678 = vadd.f32 %v628, %v657
        %v679 = vadd.f32 %v629, %v659
        %v680 = vadd.f32 %v630, %v661
        %v681 = vadd.f32 %v631, %v663
        %v682 = vadd.f32 %v632, %v665
        %v683 = vadd.f32 %v633, %v667
        %s684 = sld [smem:[#allocation3 + $0x82]]
        %v685 = vstv %s684
        %v686 = vmul.f32 %v685, %v280
        %v687 = vmul.f32 %v685, %v281
        %v688 = vmul.f32 %v685, %v282
        %v689 = vmul.f32 %v685, %v283
        %v690 = vmul.f32 %v685, %v284
        %v691 = vmul.f32 %v685, %v285
        %v692 = vmul.f32 %v685, %v286
        %v693 = vmul.f32 %v685, %v287
        %v694 = vmul.f32 %v685, %v288
        %v695 = vmul.f32 %v685, %v289
        %v696 = vmul.f32 %v685, %v290
        %v697 = vmul.f32 %v685, %v291
        %v710 = vrot.slane %v686, 1
        %v711 = vrot.slane %v687, 1
        %v712 = vsel %vm328, %v710, %v711
        %v713 = vrot.slane %v688, 1
        %v714 = vsel %vm328, %v711, %v713
        %v715 = vrot.slane %v689, 1
        %v716 = vrot.slane %v690, 1
        %v717 = vsel %vm328, %v715, %v716
        %v718 = vrot.slane %v691, 1
        %v719 = vsel %vm328, %v716, %v718
        %v720 = vrot.slane %v692, 1
        %v721 = vrot.slane %v693, 1
        %v722 = vsel %vm328, %v720, %v721
        %v723 = vrot.slane %v694, 1
        %v724 = vsel %vm328, %v721, %v723
        %v725 = vrot.slane %v695, 1
        %v726 = vrot.slane %v696, 1
        %v727 = vsel %vm328, %v725, %v726
        %v728 = vrot.slane %v697, 1
        %v729 = vsel %vm328, %v726, %v728
        %730 = vrot.lane.b32.xlu0 %v712, 126
        %v731 = vpop.permute.xlu0 %730
        %732 = vrot.lane.b32.xlu0 %v714, 126
        %v733 = vpop.permute.xlu0 %732
        %734 = vrot.lane.b32.xlu0 %v717, 126
        %v735 = vpop.permute.xlu0 %734
        %736 = vrot.lane.b32.xlu0 %v719, 126
        %v737 = vpop.permute.xlu0 %736
        %738 = vrot.lane.b32.xlu0 %v722, 126
        %v739 = vpop.permute.xlu0 %738
        %740 = vrot.lane.b32.xlu0 %v724, 126
        %v741 = vpop.permute.xlu0 %740
        %742 = vrot.lane.b32.xlu0 %v727, 126
        %v743 = vpop.permute.xlu0 %742
        %744 = vrot.lane.b32.xlu0 %v729, 126
        %v745 = vpop.permute.xlu0 %744
        %v754 = vadd.f32 %v676, %v731
        %v755 = vadd.f32 %v677, %v733
        %v756 = vadd.f32 %v678, %v735
        %v757 = vadd.f32 %v679, %v737
        %v758 = vadd.f32 %v680, %v739
        %v759 = vadd.f32 %v681, %v741
        %v760 = vadd.f32 %v682, %v743
        %v761 = vadd.f32 %v683, %v745
        %s762 = sld [smem:[#allocation3 + $0x102]]
        %v763 = vstv %s762
        %v764 = vmul.f32 %v763, %v280
        %v765 = vmul.f32 %v763, %v281
        %v766 = vmul.f32 %v763, %v282
        %v767 = vmul.f32 %v763, %v283
        %v768 = vmul.f32 %v763, %v284
        %v769 = vmul.f32 %v763, %v285
        %v770 = vmul.f32 %v763, %v286
        %v771 = vmul.f32 %v763, %v287
        %v772 = vmul.f32 %v763, %v288
        %v773 = vmul.f32 %v763, %v289
        %v774 = vmul.f32 %v763, %v290
        %v775 = vmul.f32 %v763, %v291
        %v788 = vrot.slane %v764, 2
        %v789 = vrot.slane %v765, 2
        %v790 = vsel %vm391, %v788, %v789
        %v791 = vrot.slane %v766, 2
        %v792 = vsel %vm391, %v789, %v791
        %v793 = vrot.slane %v767, 2
        %v794 = vrot.slane %v768, 2
        %v795 = vsel %vm391, %v793, %v794
        %v796 = vrot.slane %v769, 2
        %v797 = vsel %vm391, %v794, %v796
        %v798 = vrot.slane %v770, 2
        %v799 = vrot.slane %v771, 2
        %v800 = vsel %vm391, %v798, %v799
        %v801 = vrot.slane %v772, 2
        %v802 = vsel %vm391, %v799, %v801
        %v803 = vrot.slane %v773, 2
        %v804 = vrot.slane %v774, 2
        %v805 = vsel %vm391, %v803, %v804
        %v806 = vrot.slane %v775, 2
        %v807 = vsel %vm391, %v804, %v806
        %808 = vrot.lane.b32.xlu0 %v790, 126
        %v809 = vpop.permute.xlu0 %808
        %810 = vrot.lane.b32.xlu0 %v792, 126
        %v811 = vpop.permute.xlu0 %810
        %812 = vrot.lane.b32.xlu0 %v795, 126
        %v813 = vpop.permute.xlu0 %812
        %814 = vrot.lane.b32.xlu0 %v797, 126
        %v815 = vpop.permute.xlu0 %814
        %816 = vrot.lane.b32.xlu0 %v800, 126
        %v817 = vpop.permute.xlu0 %816
        %818 = vrot.lane.b32.xlu0 %v802, 126
        %v819 = vpop.permute.xlu0 %818
        %820 = vrot.lane.b32.xlu0 %v805, 126
        %v821 = vpop.permute.xlu0 %820
        %822 = vrot.lane.b32.xlu0 %v807, 126
        %v823 = vpop.permute.xlu0 %822
        %v832 = vadd.f32 %v754, %v809
        %v833 = vadd.f32 %v755, %v811
        %v834 = vadd.f32 %v756, %v813
        %v835 = vadd.f32 %v757, %v815
        %v836 = vadd.f32 %v758, %v817
        %v837 = vadd.f32 %v759, %v819
        %v838 = vadd.f32 %v760, %v821
        %v839 = vadd.f32 %v761, %v823
        %v848 = vcombine.high %v832, %v832
        %v849 = vcombine.high %v833, %v833
        %v850 = vcombine.high %v834, %v834
        %v851 = vcombine.high %v835, %v835
        %v852 = vcombine.high %v836, %v836
        %v853 = vcombine.high %v837, %v837
        %v854 = vcombine.high %v838, %v838
        %v855 = vcombine.high %v839, %v839
        %vm864 = vcmask 257024
        %v865 = vsel %vm864, %v832, -inf
        %v866 = vrot.slane %v865, 4
        %v867 = vmax.f32 %v865, %v866
        %v868 = vrot.slane %v867, 2
        %v869 = vmax.f32 %v867, %v868
        %v870 = vrot.slane %v869, 1
        %v871 = vmax.f32 %v869, %v870
        %v872 = vsel %vm864, %v848, -inf
        %v873 = vrot.slane %v872, 4
        %v874 = vmax.f32 %v872, %v873
        %v875 = vrot.slane %v874, 2
        %v876 = vmax.f32 %v874, %v875
        %v877 = vrot.slane %v876, 1
        %v878 = vmax.f32 %v876, %v877
        %v879 = vsel %vm864, %v833, -inf
        %v880 = vrot.slane %v879, 4
        %v881 = vmax.f32 %v879, %v880
        %v882 = vrot.slane %v881, 2
        %v883 = vmax.f32 %v881, %v882
        %v884 = vrot.slane %v883, 1
        %v885 = vmax.f32 %v883, %v884
        %v886 = vsel %vm864, %v849, -inf
        %v887 = vrot.slane %v886, 4
        %v888 = vmax.f32 %v886, %v887
        %v889 = vrot.slane %v888, 2
        %v890 = vmax.f32 %v888, %v889
        %v891 = vrot.slane %v890, 1
        %v892 = vmax.f32 %v890, %v891
        %v893 = vsel %vm864, %v834, -inf
        %v894 = vrot.slane %v893, 4
        %v895 = vmax.f32 %v893, %v894
        %v896 = vrot.slane %v895, 2
        %v897 = vmax.f32 %v895, %v896
        %v898 = vrot.slane %v897, 1
        %v899 = vmax.f32 %v897, %v898
        %v900 = vsel %vm864, %v850, -inf
        %v901 = vrot.slane %v900, 4
        %v902 = vmax.f32 %v900, %v901
        %v903 = vrot.slane %v902, 2
        %v904 = vmax.f32 %v902, %v903
        %v905 = vrot.slane %v904, 1
        %v906 = vmax.f32 %v904, %v905
        %v907 = vsel %vm864, %v835, -inf
        %v908 = vrot.slane %v907, 4
        %v909 = vmax.f32 %v907, %v908
        %v910 = vrot.slane %v909, 2
        %v911 = vmax.f32 %v909, %v910
        %v912 = vrot.slane %v911, 1
        %v913 = vmax.f32 %v911, %v912
        %v914 = vsel %vm864, %v851, -inf
        %v915 = vrot.slane %v914, 4
        %v916 = vmax.f32 %v914, %v915
        %v917 = vrot.slane %v916, 2
        %v918 = vmax.f32 %v916, %v917
        %v919 = vrot.slane %v918, 1
        %v920 = vmax.f32 %v918, %v919
        %v921 = vsel %vm864, %v836, -inf
        %v922 = vrot.slane %v921, 4
        %v923 = vmax.f32 %v921, %v922
        %v924 = vrot.slane %v923, 2
        %v925 = vmax.f32 %v923, %v924
        %v926 = vrot.slane %v925, 1
        %v927 = vmax.f32 %v925, %v926
        %v928 = vsel %vm864, %v852, -inf
        %v929 = vrot.slane %v928, 4
        %v930 = vmax.f32 %v928, %v929
        %v931 = vrot.slane %v930, 2
        %v932 = vmax.f32 %v930, %v931
        %v933 = vrot.slane %v932, 1
        %v934 = vmax.f32 %v932, %v933
        %v935 = vsel %vm864, %v837, -inf
        %v936 = vrot.slane %v935, 4
        %v937 = vmax.f32 %v935, %v936
        %v938 = vrot.slane %v937, 2
        %v939 = vmax.f32 %v937, %v938
        %v940 = vrot.slane %v939, 1
        %v941 = vmax.f32 %v939, %v940
        %v942 = vsel %vm864, %v853, -inf
        %v943 = vrot.slane %v942, 4
        %v944 = vmax.f32 %v942, %v943
        %v945 = vrot.slane %v944, 2
        %v946 = vmax.f32 %v944, %v945
        %v947 = vrot.slane %v946, 1
        %v948 = vmax.f32 %v946, %v947
        %v949 = vsel %vm864, %v838, -inf
        %v950 = vrot.slane %v949, 4
        %v951 = vmax.f32 %v949, %v950
        %v952 = vrot.slane %v951, 2
        %v953 = vmax.f32 %v951, %v952
        %v954 = vrot.slane %v953, 1
        %v955 = vmax.f32 %v953, %v954
        %v956 = vsel %vm864, %v854, -inf
        %v957 = vrot.slane %v956, 4
        %v958 = vmax.f32 %v956, %v957
        %v959 = vrot.slane %v958, 2
        %v960 = vmax.f32 %v958, %v959
        %v961 = vrot.slane %v960, 1
        %v962 = vmax.f32 %v960, %v961
        %v963 = vsel %vm864, %v839, -inf
        %v964 = vrot.slane %v963, 4
        %v965 = vmax.f32 %v963, %v964
        %v966 = vrot.slane %v965, 2
        %v967 = vmax.f32 %v965, %v966
        %v968 = vrot.slane %v967, 1
        %v969 = vmax.f32 %v967, %v968
        %v970 = vsel %vm864, %v855, -inf
        %v971 = vrot.slane %v970, 4
        %v972 = vmax.f32 %v970, %v971
        %v973 = vrot.slane %v972, 2
        %v974 = vmax.f32 %v972, %v973
        %v975 = vrot.slane %v974, 1
        %v976 = vmax.f32 %v974, %v975
        %993 = vrot.lane.b32.xlu0 %v871, 124
        %v994 = vpop.permute.xlu0 %993
        %995 = vrot.lane.b32.xlu0 %v878, 124
        %v996 = vpop.permute.xlu0 %995
        %997 = vrot.lane.b32.xlu0 %v885, 124
        %v998 = vpop.permute.xlu0 %997
        %999 = vrot.lane.b32.xlu0 %v892, 124
        %v1000 = vpop.permute.xlu0 %999
        %1001 = vrot.lane.b32.xlu0 %v899, 124
        %v1002 = vpop.permute.xlu0 %1001
        %1003 = vrot.lane.b32.xlu0 %v906, 124
        %v1004 = vpop.permute.xlu0 %1003
        %1005 = vrot.lane.b32.xlu0 %v913, 124
        %v1006 = vpop.permute.xlu0 %1005
        %1007 = vrot.lane.b32.xlu0 %v920, 124
        %v1008 = vpop.permute.xlu0 %1007
        %1009 = vrot.lane.b32.xlu0 %v927, 124
        %v1010 = vpop.permute.xlu0 %1009
        %1011 = vrot.lane.b32.xlu0 %v934, 124
        %v1012 = vpop.permute.xlu0 %1011
        %1013 = vrot.lane.b32.xlu0 %v941, 124
        %v1014 = vpop.permute.xlu0 %1013
        %1015 = vrot.lane.b32.xlu0 %v948, 124
        %v1016 = vpop.permute.xlu0 %1015
        %1017 = vrot.lane.b32.xlu0 %v955, 124
        %v1018 = vpop.permute.xlu0 %1017
        %1019 = vrot.lane.b32.xlu0 %v962, 124
        %v1020 = vpop.permute.xlu0 %1019
        %1021 = vrot.lane.b32.xlu0 %v969, 124
        %v1022 = vpop.permute.xlu0 %1021
        %1023 = vrot.lane.b32.xlu0 %v976, 124
        %v1024 = vpop.permute.xlu0 %1023
        %1025 = vrot.lane.b32.xlu0 %v871, 120
        %v1026 = vpop.permute.xlu0 %1025
        %1027 = vrot.lane.b32.xlu0 %v878, 120
        %v1028 = vpop.permute.xlu0 %1027
        %1029 = vrot.lane.b32.xlu0 %v885, 120
        %v1030 = vpop.permute.xlu0 %1029
        %1031 = vrot.lane.b32.xlu0 %v892, 120
        %v1032 = vpop.permute.xlu0 %1031
        %1033 = vrot.lane.b32.xlu0 %v899, 120
        %v1034 = vpop.permute.xlu0 %1033
        %1035 = vrot.lane.b32.xlu0 %v906, 120
        %v1036 = vpop.permute.xlu0 %1035
        %1037 = vrot.lane.b32.xlu0 %v913, 120
        %v1038 = vpop.permute.xlu0 %1037
        %1039 = vrot.lane.b32.xlu0 %v920, 120
        %v1040 = vpop.permute.xlu0 %1039
        %1041 = vrot.lane.b32.xlu0 %v927, 120
        %v1042 = vpop.permute.xlu0 %1041
        %1043 = vrot.lane.b32.xlu0 %v934, 120
        %v1044 = vpop.permute.xlu0 %1043
        %1045 = vrot.lane.b32.xlu0 %v941, 120
        %v1046 = vpop.permute.xlu0 %1045
        %1047 = vrot.lane.b32.xlu0 %v948, 120
        %v1048 = vpop.permute.xlu0 %1047
        %1049 = vrot.lane.b32.xlu0 %v955, 120
        %v1050 = vpop.permute.xlu0 %1049
        %1051 = vrot.lane.b32.xlu0 %v962, 120
        %v1052 = vpop.permute.xlu0 %1051
        %1053 = vrot.lane.b32.xlu0 %v969, 120
        %v1054 = vpop.permute.xlu0 %1053
        %1055 = vrot.lane.b32.xlu0 %v976, 120
        %v1056 = vpop.permute.xlu0 %1055
        %1057 = vrot.lane.b32.xlu0 %v871, 116
        %v1058 = vpop.permute.xlu0 %1057
        %1059 = vrot.lane.b32.xlu0 %v878, 116
        %v1060 = vpop.permute.xlu0 %1059
        %1061 = vrot.lane.b32.xlu0 %v885, 116
        %v1062 = vpop.permute.xlu0 %1061
        %1063 = vrot.lane.b32.xlu0 %v892, 116
        %v1064 = vpop.permute.xlu0 %1063
        %1065 = vrot.lane.b32.xlu0 %v899, 116
        %v1066 = vpop.permute.xlu0 %1065
        %1067 = vrot.lane.b32.xlu0 %v906, 116
        %v1068 = vpop.permute.xlu0 %1067
        %1069 = vrot.lane.b32.xlu0 %v913, 116
        %v1070 = vpop.permute.xlu0 %1069
        %1071 = vrot.lane.b32.xlu0 %v920, 116
        %v1072 = vpop.permute.xlu0 %1071
        %1073 = vrot.lane.b32.xlu0 %v927, 116
        %v1074 = vpop.permute.xlu0 %1073
        %1075 = vrot.lane.b32.xlu0 %v934, 116
        %v1076 = vpop.permute.xlu0 %1075
        %1077 = vrot.lane.b32.xlu0 %v941, 116
        %v1078 = vpop.permute.xlu0 %1077
        %1079 = vrot.lane.b32.xlu0 %v948, 116
        %v1080 = vpop.permute.xlu0 %1079
        %1081 = vrot.lane.b32.xlu0 %v955, 116
        %v1082 = vpop.permute.xlu0 %1081
        %1083 = vrot.lane.b32.xlu0 %v962, 116
        %v1084 = vpop.permute.xlu0 %1083
        %1085 = vrot.lane.b32.xlu0 %v969, 116
        %v1086 = vpop.permute.xlu0 %1085
        %1087 = vrot.lane.b32.xlu0 %v976, 116
        %v1088 = vpop.permute.xlu0 %1087
        %1089 = vrot.lane.b32.xlu0 %v871, 112
        %v1090 = vpop.permute.xlu0 %1089
        %1091 = vrot.lane.b32.xlu0 %v878, 112
        %v1092 = vpop.permute.xlu0 %1091
        %1093 = vrot.lane.b32.xlu0 %v885, 112
        %v1094 = vpop.permute.xlu0 %1093
        %1095 = vrot.lane.b32.xlu0 %v892, 112
        %v1096 = vpop.permute.xlu0 %1095
        %1097 = vrot.lane.b32.xlu0 %v899, 112
        %v1098 = vpop.permute.xlu0 %1097
        %1099 = vrot.lane.b32.xlu0 %v906, 112
        %v1100 = vpop.permute.xlu0 %1099
        %1101 = vrot.lane.b32.xlu0 %v913, 112
        %v1102 = vpop.permute.xlu0 %1101
        %1103 = vrot.lane.b32.xlu0 %v920, 112
        %v1104 = vpop.permute.xlu0 %1103
        %1105 = vrot.lane.b32.xlu0 %v927, 112
        %v1106 = vpop.permute.xlu0 %1105
        %1107 = vrot.lane.b32.xlu0 %v934, 112
        %v1108 = vpop.permute.xlu0 %1107
        %1109 = vrot.lane.b32.xlu0 %v941, 112
        %v1110 = vpop.permute.xlu0 %1109
        %1111 = vrot.lane.b32.xlu0 %v948, 112
        %v1112 = vpop.permute.xlu0 %1111
        %1113 = vrot.lane.b32.xlu0 %v955, 112
        %v1114 = vpop.permute.xlu0 %1113
        %1115 = vrot.lane.b32.xlu0 %v962, 112
        %v1116 = vpop.permute.xlu0 %1115
        %1117 = vrot.lane.b32.xlu0 %v969, 112
        %v1118 = vpop.permute.xlu0 %1117
        %1119 = vrot.lane.b32.xlu0 %v976, 112
        %v1120 = vpop.permute.xlu0 %1119
        %1121 = vrot.lane.b32.xlu0 %v871, 108
        %v1122 = vpop.permute.xlu0 %1121
        %1123 = vrot.lane.b32.xlu0 %v878, 108
        %v1124 = vpop.permute.xlu0 %1123
        %1125 = vrot.lane.b32.xlu0 %v885, 108
        %v1126 = vpop.permute.xlu0 %1125
        %1127 = vrot.lane.b32.xlu0 %v892, 108
        %v1128 = vpop.permute.xlu0 %1127
        %1129 = vrot.lane.b32.xlu0 %v899, 108
        %v1130 = vpop.permute.xlu0 %1129
        %1131 = vrot.lane.b32.xlu0 %v906, 108
        %v1132 = vpop.permute.xlu0 %1131
        %1133 = vrot.lane.b32.xlu0 %v913, 108
        %v1134 = vpop.permute.xlu0 %1133
        %1135 = vrot.lane.b32.xlu0 %v920, 108
        %v1136 = vpop.permute.xlu0 %1135
        %1137 = vrot.lane.b32.xlu0 %v927, 108
        %v1138 = vpop.permute.xlu0 %1137
        %1139 = vrot.lane.b32.xlu0 %v934, 108
        %v1140 = vpop.permute.xlu0 %1139
        %1141 = vrot.lane.b32.xlu0 %v941, 108
        %v1142 = vpop.permute.xlu0 %1141
        %1143 = vrot.lane.b32.xlu0 %v948, 108
        %v1144 = vpop.permute.xlu0 %1143
        %1145 = vrot.lane.b32.xlu0 %v955, 108
        %v1146 = vpop.permute.xlu0 %1145
        %1147 = vrot.lane.b32.xlu0 %v962, 108
        %v1148 = vpop.permute.xlu0 %1147
        %1149 = vrot.lane.b32.xlu0 %v969, 108
        %v1150 = vpop.permute.xlu0 %1149
        %1151 = vrot.lane.b32.xlu0 %v976, 108
        %v1152 = vpop.permute.xlu0 %1151
        %1153 = vrot.lane.b32.xlu0 %v871, 104
        %v1154 = vpop.permute.xlu0 %1153
        %1155 = vrot.lane.b32.xlu0 %v878, 104
        %v1156 = vpop.permute.xlu0 %1155
        %1157 = vrot.lane.b32.xlu0 %v885, 104
        %v1158 = vpop.permute.xlu0 %1157
        %1159 = vrot.lane.b32.xlu0 %v892, 104
        %v1160 = vpop.permute.xlu0 %1159
        %1161 = vrot.lane.b32.xlu0 %v899, 104
        %v1162 = vpop.permute.xlu0 %1161
        %1163 = vrot.lane.b32.xlu0 %v906, 104
        %v1164 = vpop.permute.xlu0 %1163
        %1165 = vrot.lane.b32.xlu0 %v913, 104
        %v1166 = vpop.permute.xlu0 %1165
        %1167 = vrot.lane.b32.xlu0 %v920, 104
        %v1168 = vpop.permute.xlu0 %1167
        %1169 = vrot.lane.b32.xlu0 %v927, 104
        %v1170 = vpop.permute.xlu0 %1169
        %1171 = vrot.lane.b32.xlu0 %v934, 104
        %v1172 = vpop.permute.xlu0 %1171
        %1173 = vrot.lane.b32.xlu0 %v941, 104
        %v1174 = vpop.permute.xlu0 %1173
        %1175 = vrot.lane.b32.xlu0 %v948, 104
        %v1176 = vpop.permute.xlu0 %1175
        %1177 = vrot.lane.b32.xlu0 %v955, 104
        %v1178 = vpop.permute.xlu0 %1177
        %1179 = vrot.lane.b32.xlu0 %v962, 104
        %v1180 = vpop.permute.xlu0 %1179
        %1181 = vrot.lane.b32.xlu0 %v969, 104
        %v1182 = vpop.permute.xlu0 %1181
        %1183 = vrot.lane.b32.xlu0 %v976, 104
        %v1184 = vpop.permute.xlu0 %1183
        %1185 = vrot.lane.b32.xlu0 %v871, 100
        %v1186 = vpop.permute.xlu0 %1185
        %1187 = vrot.lane.b32.xlu0 %v878, 100
        %v1188 = vpop.permute.xlu0 %1187
        %1189 = vrot.lane.b32.xlu0 %v885, 100
        %v1190 = vpop.permute.xlu0 %1189
        %1191 = vrot.lane.b32.xlu0 %v892, 100
        %v1192 = vpop.permute.xlu0 %1191
        %1193 = vrot.lane.b32.xlu0 %v899, 100
        %v1194 = vpop.permute.xlu0 %1193
        %1195 = vrot.lane.b32.xlu0 %v906, 100
        %v1196 = vpop.permute.xlu0 %1195
        %1197 = vrot.lane.b32.xlu0 %v913, 100
        %v1198 = vpop.permute.xlu0 %1197
        %1199 = vrot.lane.b32.xlu0 %v920, 100
        %v1200 = vpop.permute.xlu0 %1199
        %1201 = vrot.lane.b32.xlu0 %v927, 100
        %v1202 = vpop.permute.xlu0 %1201
        %1203 = vrot.lane.b32.xlu0 %v934, 100
        %v1204 = vpop.permute.xlu0 %1203
        %1205 = vrot.lane.b32.xlu0 %v941, 100
        %v1206 = vpop.permute.xlu0 %1205
        %1207 = vrot.lane.b32.xlu0 %v948, 100
        %v1208 = vpop.permute.xlu0 %1207
        %1209 = vrot.lane.b32.xlu0 %v955, 100
        %v1210 = vpop.permute.xlu0 %1209
        %1211 = vrot.lane.b32.xlu0 %v962, 100
        %v1212 = vpop.permute.xlu0 %1211
        %1213 = vrot.lane.b32.xlu0 %v969, 100
        %v1214 = vpop.permute.xlu0 %1213
        %1215 = vrot.lane.b32.xlu0 %v976, 100
        %v1216 = vpop.permute.xlu0 %1215
        %v1217 = vrot.slane %v878, 7
        %vm1218 = vcmask 1041409
        %v1219 = vsel %vm1218, %v1217, %v871
        %v1220 = vrot.slane %v885, 6
        %vm1221 = vcmask 1042434
        %v1222 = vsel %vm1221, %v1220, %v1219
        %v1223 = vrot.slane %v892, 5
        %vm1224 = vcmask 1043459
        %v1225 = vsel %vm1224, %v1223, %v1222
        %v1226 = vrot.slane %v996, 7
        %v1227 = vsel %vm1218, %v1226, %v994
        %v1228 = vrot.slane %v998, 6
        %v1229 = vsel %vm1221, %v1228, %v1227
        %v1230 = vrot.slane %v1000, 5
        %v1231 = vsel %vm1224, %v1230, %v1229
        %v1232 = vrot.slane %v1028, 7
        %v1233 = vsel %vm1218, %v1232, %v1026
        %v1234 = vrot.slane %v1030, 6
        %v1235 = vsel %vm1221, %v1234, %v1233
        %v1236 = vrot.slane %v1032, 5
        %v1237 = vsel %vm1224, %v1236, %v1235
        %v1238 = vrot.slane %v1060, 7
        %v1239 = vsel %vm1218, %v1238, %v1058
        %v1240 = vrot.slane %v1062, 6
        %v1241 = vsel %vm1221, %v1240, %v1239
        %v1242 = vrot.slane %v1064, 5
        %v1243 = vsel %vm1224, %v1242, %v1241
        %v1244 = vrot.slane %v1092, 7
        %v1245 = vsel %vm1218, %v1244, %v1090
        %v1246 = vrot.slane %v1094, 6
        %v1247 = vsel %vm1221, %v1246, %v1245
        %v1248 = vrot.slane %v1096, 5
        %v1249 = vsel %vm1224, %v1248, %v1247
        %v1250 = vrot.slane %v1124, 7
        %v1251 = vsel %vm1218, %v1250, %v1122
        %v1252 = vrot.slane %v1126, 6
        %v1253 = vsel %vm1221, %v1252, %v1251
        %v1254 = vrot.slane %v1128, 5
        %v1255 = vsel %vm1224, %v1254, %v1253
        %v1256 = vrot.slane %v1156, 7
        %v1257 = vsel %vm1218, %v1256, %v1154
        %v1258 = vrot.slane %v1158, 6
        %v1259 = vsel %vm1221, %v1258, %v1257
        %v1260 = vrot.slane %v1160, 5
        %v1261 = vsel %vm1224, %v1260, %v1259
        %v1262 = vrot.slane %v1188, 7
        %v1263 = vsel %vm1218, %v1262, %v1186
        %v1264 = vrot.slane %v1190, 6
        %v1265 = vsel %vm1221, %v1264, %v1263
        %v1266 = vrot.slane %v1192, 5
        %v1267 = vsel %vm1224, %v1266, %v1265
        %v1268 = vrot.slane %v906, 7
        %v1269 = vsel %vm1218, %v1268, %v899
        %v1270 = vrot.slane %v913, 6
        %v1271 = vsel %vm1221, %v1270, %v1269
        %v1272 = vrot.slane %v920, 5
        %v1273 = vsel %vm1224, %v1272, %v1271
        %v1274 = vrot.slane %v1004, 7
        %v1275 = vsel %vm1218, %v1274, %v1002
        %v1276 = vrot.slane %v1006, 6
        %v1277 = vsel %vm1221, %v1276, %v1275
        %v1278 = vrot.slane %v1008, 5
        %v1279 = vsel %vm1224, %v1278, %v1277
        %v1280 = vrot.slane %v1036, 7
        %v1281 = vsel %vm1218, %v1280, %v1034
        %v1282 = vrot.slane %v1038, 6
        %v1283 = vsel %vm1221, %v1282, %v1281
        %v1284 = vrot.slane %v1040, 5
        %v1285 = vsel %vm1224, %v1284, %v1283
        %v1286 = vrot.slane %v1068, 7
        %v1287 = vsel %vm1218, %v1286, %v1066
        %v1288 = vrot.slane %v1070, 6
        %v1289 = vsel %vm1221, %v1288, %v1287
        %v1290 = vrot.slane %v1072, 5
        %v1291 = vsel %vm1224, %v1290, %v1289
        %v1292 = vrot.slane %v1100, 7
        %v1293 = vsel %vm1218, %v1292, %v1098
        %v1294 = vrot.slane %v1102, 6
        %v1295 = vsel %vm1221, %v1294, %v1293
        %v1296 = vrot.slane %v1104, 5
        %v1297 = vsel %vm1224, %v1296, %v1295
        %v1298 = vrot.slane %v1132, 7
        %v1299 = vsel %vm1218, %v1298, %v1130
        %v1300 = vrot.slane %v1134, 6
        %v1301 = vsel %vm1221, %v1300, %v1299
        %v1302 = vrot.slane %v1136, 5
        %v1303 = vsel %vm1224, %v1302, %v1301
        %v1304 = vrot.slane %v1164, 7
        %v1305 = vsel %vm1218, %v1304, %v1162
        %v1306 = vrot.slane %v1166, 6
        %v1307 = vsel %vm1221, %v1306, %v1305
        %v1308 = vrot.slane %v1168, 5
        %v1309 = vsel %vm1224, %v1308, %v1307
        %v1310 = vrot.slane %v1196, 7
        %v1311 = vsel %vm1218, %v1310, %v1194
        %v1312 = vrot.slane %v1198, 6
        %v1313 = vsel %vm1221, %v1312, %v1311
        %v1314 = vrot.slane %v1200, 5
        %v1315 = vsel %vm1224, %v1314, %v1313
        %v1316 = vrot.slane %v934, 7
        %v1317 = vsel %vm1218, %v1316, %v927
        %v1318 = vrot.slane %v941, 6
        %v1319 = vsel %vm1221, %v1318, %v1317
        %v1320 = vrot.slane %v948, 5
        %v1321 = vsel %vm1224, %v1320, %v1319
        %v1322 = vrot.slane %v1012, 7
        %v1323 = vsel %vm1218, %v1322, %v1010
        %v1324 = vrot.slane %v1014, 6
        %v1325 = vsel %vm1221, %v1324, %v1323
        %v1326 = vrot.slane %v1016, 5
        %v1327 = vsel %vm1224, %v1326, %v1325
        %v1328 = vrot.slane %v1044, 7
        %v1329 = vsel %vm1218, %v1328, %v1042
        %v1330 = vrot.slane %v1046, 6
        %v1331 = vsel %vm1221, %v1330, %v1329
        %v1332 = vrot.slane %v1048, 5
        %v1333 = vsel %vm1224, %v1332, %v1331
        %v1334 = vrot.slane %v1076, 7
        %v1335 = vsel %vm1218, %v1334, %v1074
        %v1336 = vrot.slane %v1078, 6
        %v1337 = vsel %vm1221, %v1336, %v1335
        %v1338 = vrot.slane %v1080, 5
        %v1339 = vsel %vm1224, %v1338, %v1337
        %v1340 = vrot.slane %v1108, 7
        %v1341 = vsel %vm1218, %v1340, %v1106
        %v1342 = vrot.slane %v1110, 6
        %v1343 = vsel %vm1221, %v1342, %v1341
        %v1344 = vrot.slane %v1112, 5
        %v1345 = vsel %vm1224, %v1344, %v1343
        %v1346 = vrot.slane %v1140, 7
        %v1347 = vsel %vm1218, %v1346, %v1138
        %v1348 = vrot.slane %v1142, 6
        %v1349 = vsel %vm1221, %v1348, %v1347
        %v1350 = vrot.slane %v1144, 5
        %v1351 = vsel %vm1224, %v1350, %v1349
        %v1352 = vrot.slane %v1172, 7
        %v1353 = vsel %vm1218, %v1352, %v1170
        %v1354 = vrot.slane %v1174, 6
        %v1355 = vsel %vm1221, %v1354, %v1353
        %v1356 = vrot.slane %v1176, 5
        %v1357 = vsel %vm1224, %v1356, %v1355
        %v1358 = vrot.slane %v1204, 7
        %v1359 = vsel %vm1218, %v1358, %v1202
        %v1360 = vrot.slane %v1206, 6
        %v1361 = vsel %vm1221, %v1360, %v1359
        %v1362 = vrot.slane %v1208, 5
        %v1363 = vsel %vm1224, %v1362, %v1361
        %v1364 = vrot.slane %v962, 7
        %v1365 = vsel %vm1218, %v1364, %v955
        %v1366 = vrot.slane %v969, 6
        %v1367 = vsel %vm1221, %v1366, %v1365
        %v1368 = vrot.slane %v976, 5
        %v1369 = vsel %vm1224, %v1368, %v1367
        %v1370 = vrot.slane %v1020, 7
        %v1371 = vsel %vm1218, %v1370, %v1018
        %v1372 = vrot.slane %v1022, 6
        %v1373 = vsel %vm1221, %v1372, %v1371
        %v1374 = vrot.slane %v1024, 5
        %v1375 = vsel %vm1224, %v1374, %v1373
        %v1376 = vrot.slane %v1052, 7
        %v1377 = vsel %vm1218, %v1376, %v1050
        %v1378 = vrot.slane %v1054, 6
        %v1379 = vsel %vm1221, %v1378, %v1377
        %v1380 = vrot.slane %v1056, 5
        %v1381 = vsel %vm1224, %v1380, %v1379
        %v1382 = vrot.slane %v1084, 7
        %v1383 = vsel %vm1218, %v1382, %v1082
        %v1384 = vrot.slane %v1086, 6
        %v1385 = vsel %vm1221, %v1384, %v1383
        %v1386 = vrot.slane %v1088, 5
        %v1387 = vsel %vm1224, %v1386, %v1385
        %v1388 = vrot.slane %v1116, 7
        %v1389 = vsel %vm1218, %v1388, %v1114
        %v1390 = vrot.slane %v1118, 6
        %v1391 = vsel %vm1221, %v1390, %v1389
        %v1392 = vrot.slane %v1120, 5
        %v1393 = vsel %vm1224, %v1392, %v1391
        %v1394 = vrot.slane %v1148, 7
        %v1395 = vsel %vm1218, %v1394, %v1146
        %v1396 = vrot.slane %v1150, 6
        %v1397 = vsel %vm1221, %v1396, %v1395
        %v1398 = vrot.slane %v1152, 5
        %v1399 = vsel %vm1224, %v1398, %v1397
        %v1400 = vrot.slane %v1180, 7
        %v1401 = vsel %vm1218, %v1400, %v1178
        %v1402 = vrot.slane %v1182, 6
        %v1403 = vsel %vm1221, %v1402, %v1401
        %v1404 = vrot.slane %v1184, 5
        %v1405 = vsel %vm1224, %v1404, %v1403
        %v1406 = vrot.slane %v1212, 7
        %v1407 = vsel %vm1218, %v1406, %v1210
        %v1408 = vrot.slane %v1214, 6
        %v1409 = vsel %vm1221, %v1408, %v1407
        %v1410 = vrot.slane %v1216, 5
        %v1411 = vsel %vm1224, %v1410, %v1409
        %v1444 = vcombine.low %v1225, %v1237
        %v1446 = vunpack.c.l.s4 1983009808
        %v1447 = vunpack.c.0.s8 %v1446
        %v1448 = vlaneseq
        %v1449 = vshrl.u32 %v1448, 7
        %v1450 = vsub.s32 %v1447, %v1449
        %v1451 = vrot.slane %v1444, %v1450
        %v1452 = vcombine.low %v1231, %v1243
        %v1454 = vunpack.c.l.s4 1983009808
        %v1455 = vunpack.c.0.s8 %v1454
        %v1456 = vlaneseq
        %v1457 = vshrl.u32 %v1456, 7
        %v1458 = vsub.s32 %v1455, %v1457
        %v1459 = vrot.slane %v1452, %v1458
        %v1460 = vcombine.low %v1249, %v1261
        %v1462 = vunpack.c.l.s4 1983009808
        %v1463 = vunpack.c.0.s8 %v1462
        %v1464 = vlaneseq
        %v1465 = vshrl.u32 %v1464, 7
        %v1466 = vsub.s32 %v1463, %v1465
        %v1467 = vrot.slane %v1460, %v1466
        %v1468 = vcombine.low %v1255, %v1267
        %v1470 = vunpack.c.l.s4 1983009808
        %v1471 = vunpack.c.0.s8 %v1470
        %v1472 = vlaneseq
        %v1473 = vshrl.u32 %v1472, 7
        %v1474 = vsub.s32 %v1471, %v1473
        %v1475 = vrot.slane %v1468, %v1474
        %v1476 = vcombine.low %v1451, %v1459
        %v1477 = vcombine.high %v1451, %v1459
        %v1479 = vunpack.c.l.s4 1934713408
        %v1480 = vunpack.c.0.s8 %v1479
        %v1481 = vlaneseq
        %v1482 = vshrl.u32 %v1481, 7
        %v1483 = vsub.s32 %v1480, %v1482
        %v1484 = vrot.slane %v1476, %v1483
        %v1486 = vunpack.c.l.s4 1934713408
        %v1487 = vunpack.c.0.s8 %v1486
        %v1488 = vlaneseq
        %v1489 = vshrl.u32 %v1488, 7
        %v1490 = vsub.s32 %v1487, %v1489
        %v1491 = vrot.slane %v1477, %v1490
        %v1492 = vcombine.low %v1467, %v1475
        %v1493 = vcombine.high %v1467, %v1475
        %v1495 = vunpack.c.l.s4 1934713408
        %v1496 = vunpack.c.0.s8 %v1495
        %v1497 = vlaneseq
        %v1498 = vshrl.u32 %v1497, 7
        %v1499 = vsub.s32 %v1496, %v1498
        %v1500 = vrot.slane %v1492, %v1499
        %v1502 = vunpack.c.l.s4 1934713408
        %v1503 = vunpack.c.0.s8 %v1502
        %v1504 = vlaneseq
        %v1505 = vshrl.u32 %v1504, 7
        %v1506 = vsub.s32 %v1503, %v1505
        %v1507 = vrot.slane %v1493, %v1506
        %v1508 = vcombine.low %v1484, %v1500
        %v1509 = vcombine.high %v1484, %v1500
        %v1510 = vcombine.low %v1491, %v1507
        %v1511 = vcombine.high %v1491, %v1507
        %v1512 = vcombine.low %v1273, %v1285
        %v1514 = vunpack.c.l.s4 1983009808
        %v1515 = vunpack.c.0.s8 %v1514
        %v1516 = vlaneseq
        %v1517 = vshrl.u32 %v1516, 7
        %v1518 = vsub.s32 %v1515, %v1517
        %v1519 = vrot.slane %v1512, %v1518
        %v1520 = vcombine.low %v1279, %v1291
        %v1522 = vunpack.c.l.s4 1983009808
        %v1523 = vunpack.c.0.s8 %v1522
        %v1524 = vlaneseq
        %v1525 = vshrl.u32 %v1524, 7
        %v1526 = vsub.s32 %v1523, %v1525
        %v1527 = vrot.slane %v1520, %v1526
        %v1528 = vcombine.low %v1297, %v1309
        %v1530 = vunpack.c.l.s4 1983009808
        %v1531 = vunpack.c.0.s8 %v1530
        %v1532 = vlaneseq
        %v1533 = vshrl.u32 %v1532, 7
        %v1534 = vsub.s32 %v1531, %v1533
        %v1535 = vrot.slane %v1528, %v1534
        %v1536 = vcombine.low %v1303, %v1315
        %v1538 = vunpack.c.l.s4 1983009808
        %v1539 = vunpack.c.0.s8 %v1538
        %v1540 = vlaneseq
        %v1541 = vshrl.u32 %v1540, 7
        %v1542 = vsub.s32 %v1539, %v1541
        %v1543 = vrot.slane %v1536, %v1542
        %v1544 = vcombine.low %v1519, %v1527
        %v1545 = vcombine.high %v1519, %v1527
        %v1547 = vunpack.c.l.s4 1934713408
        %v1548 = vunpack.c.0.s8 %v1547
        %v1549 = vlaneseq
        %v1550 = vshrl.u32 %v1549, 7
        %v1551 = vsub.s32 %v1548, %v1550
        %v1552 = vrot.slane %v1544, %v1551
        %v1554 = vunpack.c.l.s4 1934713408
        %v1555 = vunpack.c.0.s8 %v1554
        %v1556 = vlaneseq
        %v1557 = vshrl.u32 %v1556, 7
        %v1558 = vsub.s32 %v1555, %v1557
        %v1559 = vrot.slane %v1545, %v1558
        %v1560 = vcombine.low %v1535, %v1543
        %v1561 = vcombine.high %v1535, %v1543
        %v1563 = vunpack.c.l.s4 1934713408
        %v1564 = vunpack.c.0.s8 %v1563
        %v1565 = vlaneseq
        %v1566 = vshrl.u32 %v1565, 7
        %v1567 = vsub.s32 %v1564, %v1566
        %v1568 = vrot.slane %v1560, %v1567
        %v1570 = vunpack.c.l.s4 1934713408
        %v1571 = vunpack.c.0.s8 %v1570
        %v1572 = vlaneseq
        %v1573 = vshrl.u32 %v1572, 7
        %v1574 = vsub.s32 %v1571, %v1573
        %v1575 = vrot.slane %v1561, %v1574
        %v1576 = vcombine.low %v1552, %v1568
        %v1577 = vcombine.high %v1552, %v1568
        %v1578 = vcombine.low %v1559, %v1575
        %v1579 = vcombine.high %v1559, %v1575
        %v1580 = vcombine.low %v1321, %v1333
        %v1582 = vunpack.c.l.s4 1983009808
        %v1583 = vunpack.c.0.s8 %v1582
        %v1584 = vlaneseq
        %v1585 = vshrl.u32 %v1584, 7
        %v1586 = vsub.s32 %v1583, %v1585
        %v1587 = vrot.slane %v1580, %v1586
        %v1588 = vcombine.low %v1327, %v1339
        %v1590 = vunpack.c.l.s4 1983009808
        %v1591 = vunpack.c.0.s8 %v1590
        %v1592 = vlaneseq
        %v1593 = vshrl.u32 %v1592, 7
        %v1594 = vsub.s32 %v1591, %v1593
        %v1595 = vrot.slane %v1588, %v1594
        %v1596 = vcombine.low %v1345, %v1357
        %v1598 = vunpack.c.l.s4 1983009808
        %v1599 = vunpack.c.0.s8 %v1598
        %v1600 = vlaneseq
        %v1601 = vshrl.u32 %v1600, 7
        %v1602 = vsub.s32 %v1599, %v1601
        %v1603 = vrot.slane %v1596, %v1602
        %v1604 = vcombine.low %v1351, %v1363
        %v1606 = vunpack.c.l.s4 1983009808
        %v1607 = vunpack.c.0.s8 %v1606
        %v1608 = vlaneseq
        %v1609 = vshrl.u32 %v1608, 7
        %v1610 = vsub.s32 %v1607, %v1609
        %v1611 = vrot.slane %v1604, %v1610
        %v1612 = vcombine.low %v1587, %v1595
        %v1613 = vcombine.high %v1587, %v1595
        %v1615 = vunpack.c.l.s4 1934713408
        %v1616 = vunpack.c.0.s8 %v1615
        %v1617 = vlaneseq
        %v1618 = vshrl.u32 %v1617, 7
        %v1619 = vsub.s32 %v1616, %v1618
        %v1620 = vrot.slane %v1612, %v1619
        %v1622 = vunpack.c.l.s4 1934713408
        %v1623 = vunpack.c.0.s8 %v1622
        %v1624 = vlaneseq
        %v1625 = vshrl.u32 %v1624, 7
        %v1626 = vsub.s32 %v1623, %v1625
        %v1627 = vrot.slane %v1613, %v1626
        %v1628 = vcombine.low %v1603, %v1611
        %v1629 = vcombine.high %v1603, %v1611
        %v1631 = vunpack.c.l.s4 1934713408
        %v1632 = vunpack.c.0.s8 %v1631
        %v1633 = vlaneseq
        %v1634 = vshrl.u32 %v1633, 7
        %v1635 = vsub.s32 %v1632, %v1634
        %v1636 = vrot.slane %v1628, %v1635
        %v1638 = vunpack.c.l.s4 1934713408
        %v1639 = vunpack.c.0.s8 %v1638
        %v1640 = vlaneseq
        %v1641 = vshrl.u32 %v1640, 7
        %v1642 = vsub.s32 %v1639, %v1641
        %v1643 = vrot.slane %v1629, %v1642
        %v1644 = vcombine.low %v1620, %v1636
        %v1645 = vcombine.high %v1620, %v1636
        %v1646 = vcombine.low %v1627, %v1643
        %v1647 = vcombine.high %v1627, %v1643
        %v1648 = vcombine.low %v1369, %v1381
        %v1650 = vunpack.c.l.s4 1983009808
        %v1651 = vunpack.c.0.s8 %v1650
        %v1652 = vlaneseq
        %v1653 = vshrl.u32 %v1652, 7
        %v1654 = vsub.s32 %v1651, %v1653
        %v1655 = vrot.slane %v1648, %v1654
        %v1656 = vcombine.low %v1375, %v1387
        %v1658 = vunpack.c.l.s4 1983009808
        %v1659 = vunpack.c.0.s8 %v1658
        %v1660 = vlaneseq
        %v1661 = vshrl.u32 %v1660, 7
        %v1662 = vsub.s32 %v1659, %v1661
        %v1663 = vrot.slane %v1656, %v1662
        %v1664 = vcombine.low %v1393, %v1405
        %v1666 = vunpack.c.l.s4 1983009808
        %v1667 = vunpack.c.0.s8 %v1666
        %v1668 = vlaneseq
        %v1669 = vshrl.u32 %v1668, 7
        %v1670 = vsub.s32 %v1667, %v1669
        %v1671 = vrot.slane %v1664, %v1670
        %v1672 = vcombine.low %v1399, %v1411
        %v1674 = vunpack.c.l.s4 1983009808
        %v1675 = vunpack.c.0.s8 %v1674
        %v1676 = vlaneseq
        %v1677 = vshrl.u32 %v1676, 7
        %v1678 = vsub.s32 %v1675, %v1677
        %v1679 = vrot.slane %v1672, %v1678
        %v1680 = vcombine.low %v1655, %v1663
        %v1681 = vcombine.high %v1655, %v1663
        %v1683 = vunpack.c.l.s4 1934713408
        %v1684 = vunpack.c.0.s8 %v1683
        %v1685 = vlaneseq
        %v1686 = vshrl.u32 %v1685, 7
        %v1687 = vsub.s32 %v1684, %v1686
        %v1688 = vrot.slane %v1680, %v1687
        %v1690 = vunpack.c.l.s4 1934713408
        %v1691 = vunpack.c.0.s8 %v1690
        %v1692 = vlaneseq
        %v1693 = vshrl.u32 %v1692, 7
        %v1694 = vsub.s32 %v1691, %v1693
        %v1695 = vrot.slane %v1681, %v1694
        %v1696 = vcombine.low %v1671, %v1679
        %v1697 = vcombine.high %v1671, %v1679
        %v1699 = vunpack.c.l.s4 1934713408
        %v1700 = vunpack.c.0.s8 %v1699
        %v1701 = vlaneseq
        %v1702 = vshrl.u32 %v1701, 7
        %v1703 = vsub.s32 %v1700, %v1702
        %v1704 = vrot.slane %v1696, %v1703
        %v1706 = vunpack.c.l.s4 1934713408
        %v1707 = vunpack.c.0.s8 %v1706
        %v1708 = vlaneseq
        %v1709 = vshrl.u32 %v1708, 7
        %v1710 = vsub.s32 %v1707, %v1709
        %v1711 = vrot.slane %v1697, %v1710
        %v1712 = vcombine.low %v1688, %v1704
        %v1713 = vcombine.high %v1688, %v1704
        %v1714 = vcombine.low %v1695, %v1711
        %v1715 = vcombine.high %v1695, %v1711
        %vm1716 = vcmask 31744
        %v1717 = vsel %vm1716, %v1508, -inf
        %1718 = vmax.xlane.f32.xlu0 %v1717
        %v1719 = vpop.xlane.xlu0 %1718
        %v1720 = vsel %vm1716, %v1509, -inf
        %1721 = vmax.xlane.f32.xlu0 %v1720
        %v1722 = vpop.xlane.xlu0 %1721
        %v1723 = vsel %vm1716, %v1510, -inf
        %1724 = vmax.xlane.f32.xlu0 %v1723
        %v1725 = vpop.xlane.xlu0 %1724
        %v1726 = vsel %vm1716, %v1511, -inf
        %1727 = vmax.xlane.f32.xlu0 %v1726
        %v1728 = vpop.xlane.xlu0 %1727
        %v1729 = vsel %vm1716, %v1576, -inf
        %1730 = vmax.xlane.f32.xlu0 %v1729
        %v1731 = vpop.xlane.xlu0 %1730
        %v1732 = vsel %vm1716, %v1577, -inf
        %1733 = vmax.xlane.f32.xlu0 %v1732
        %v1734 = vpop.xlane.xlu0 %1733
        %v1735 = vsel %vm1716, %v1578, -inf
        %1736 = vmax.xlane.f32.xlu0 %v1735
        %v1737 = vpop.xlane.xlu0 %1736
        %v1738 = vsel %vm1716, %v1579, -inf
        %1739 = vmax.xlane.f32.xlu0 %v1738
        %v1740 = vpop.xlane.xlu0 %1739
        %v1741 = vsel %vm1716, %v1644, -inf
        %1742 = vmax.xlane.f32.xlu0 %v1741
        %v1743 = vpop.xlane.xlu0 %1742
        %v1744 = vsel %vm1716, %v1645, -inf
        %1745 = vmax.xlane.f32.xlu0 %v1744
        %v1746 = vpop.xlane.xlu0 %1745
        %v1747 = vsel %vm1716, %v1646, -inf
        %1748 = vmax.xlane.f32.xlu0 %v1747
        %v1749 = vpop.xlane.xlu0 %1748
        %v1750 = vsel %vm1716, %v1647, -inf
        %1751 = vmax.xlane.f32.xlu0 %v1750
        %v1752 = vpop.xlane.xlu0 %1751
        %v1753 = vsel %vm1716, %v1712, -inf
        %1754 = vmax.xlane.f32.xlu0 %v1753
        %v1755 = vpop.xlane.xlu0 %1754
        %v1756 = vsel %vm1716, %v1713, -inf
        %1757 = vmax.xlane.f32.xlu0 %v1756
        %v1758 = vpop.xlane.xlu0 %1757
        %v1759 = vsel %vm1716, %v1714, -inf
        %1760 = vmax.xlane.f32.xlu0 %v1759
        %v1761 = vpop.xlane.xlu0 %1760
        %v1762 = vsel %vm1716, %v1715, -inf
        %1763 = vmax.xlane.f32.xlu0 %v1762
        %v1764 = vpop.xlane.xlu0 %1763
        %v1781 = vlaneseq
        %v1782 = vand.u32 %v1781, 127
        %v1783 = vlaneseq
        %v1784 = vshrl.u32 %v1783, 7
        %v1785 = vsub.s32 %v1782, %v1784
        %v1786 = vrot.slane %v1719, %v1785
        %v1787 = vlaneseq
        %v1788 = vshrl.u32 %v1787, 7
        %v1789 = vsub.s32 %v1782, %v1788
        %v1790 = vrot.slane %v1722, %v1789
        %v1791 = vlaneseq
        %v1792 = vshrl.u32 %v1791, 7
        %v1793 = vsub.s32 %v1782, %v1792
        %v1794 = vrot.slane %v1725, %v1793
        %v1795 = vlaneseq
        %v1796 = vshrl.u32 %v1795, 7
        %v1797 = vsub.s32 %v1782, %v1796
        %v1798 = vrot.slane %v1728, %v1797
        %v1799 = vlaneseq
        %v1800 = vshrl.u32 %v1799, 7
        %v1801 = vsub.s32 %v1782, %v1800
        %v1802 = vrot.slane %v1731, %v1801
        %v1803 = vlaneseq
        %v1804 = vshrl.u32 %v1803, 7
        %v1805 = vsub.s32 %v1782, %v1804
        %v1806 = vrot.slane %v1734, %v1805
        %v1807 = vlaneseq
        %v1808 = vshrl.u32 %v1807, 7
        %v1809 = vsub.s32 %v1782, %v1808
        %v1810 = vrot.slane %v1737, %v1809
        %v1811 = vlaneseq
        %v1812 = vshrl.u32 %v1811, 7
        %v1813 = vsub.s32 %v1782, %v1812
        %v1814 = vrot.slane %v1740, %v1813
        %v1815 = vlaneseq
        %v1816 = vshrl.u32 %v1815, 7
        %v1817 = vsub.s32 %v1782, %v1816
        %v1818 = vrot.slane %v1743, %v1817
        %v1819 = vlaneseq
        %v1820 = vshrl.u32 %v1819, 7
        %v1821 = vsub.s32 %v1782, %v1820
        %v1822 = vrot.slane %v1746, %v1821
        %v1823 = vlaneseq
        %v1824 = vshrl.u32 %v1823, 7
        %v1825 = vsub.s32 %v1782, %v1824
        %v1826 = vrot.slane %v1749, %v1825
        %v1827 = vlaneseq
        %v1828 = vshrl.u32 %v1827, 7
        %v1829 = vsub.s32 %v1782, %v1828
        %v1830 = vrot.slane %v1752, %v1829
        %v1831 = vlaneseq
        %v1832 = vshrl.u32 %v1831, 7
        %v1833 = vsub.s32 %v1782, %v1832
        %v1834 = vrot.slane %v1755, %v1833
        %v1835 = vlaneseq
        %v1836 = vshrl.u32 %v1835, 7
        %v1837 = vsub.s32 %v1782, %v1836
        %v1838 = vrot.slane %v1758, %v1837
        %v1839 = vlaneseq
        %v1840 = vshrl.u32 %v1839, 7
        %v1841 = vsub.s32 %v1782, %v1840
        %v1842 = vrot.slane %v1761, %v1841
        %v1843 = vlaneseq
        %v1844 = vshrl.u32 %v1843, 7
        %v1845 = vsub.s32 %v1782, %v1844
        %v1846 = vrot.slane %v1764, %v1845
        %v1847 = vsel %vm1218, %v1790, %v1786
        %v1848 = vsel %vm1221, %v1794, %v1847
        %v1849 = vsel %vm1224, %v1798, %v1848
        %v1850 = vsel %vm1218, %v1806, %v1802
        %v1851 = vsel %vm1221, %v1810, %v1850
        %v1852 = vsel %vm1224, %v1814, %v1851
        %v1853 = vsel %vm1218, %v1822, %v1818
        %v1854 = vsel %vm1221, %v1826, %v1853
        %v1855 = vsel %vm1224, %v1830, %v1854
        %v1856 = vsel %vm1218, %v1838, %v1834
        %v1857 = vsel %vm1221, %v1842, %v1856
        %v1858 = vsel %vm1224, %v1846, %v1857
        %v1863 = vcombine.low %v1849, %v1855
        %v1865 = vunpack.c.l.s4 1983009808
        %v1866 = vunpack.c.0.s8 %v1865
        %v1867 = vlaneseq
        %v1868 = vshrl.u32 %v1867, 7
        %v1869 = vsub.s32 %v1866, %v1868
        %v1870 = vrot.slane %v1863, %v1869
        %v1871 = vcombine.low %v1852, %v1858
        %v1873 = vunpack.c.l.s4 1983009808
        %v1874 = vunpack.c.0.s8 %v1873
        %v1875 = vlaneseq
        %v1876 = vshrl.u32 %v1875, 7
        %v1877 = vsub.s32 %v1874, %v1876
        %v1878 = vrot.slane %v1871, %v1877
        %v1879 = vcombine.low %v1870, %v1878
        %v1880 = vcombine.high %v1870, %v1878
        %v1882 = vunpack.c.l.s4 1934713408
        %v1883 = vunpack.c.0.s8 %v1882
        %v1884 = vlaneseq
        %v1885 = vshrl.u32 %v1884, 7
        %v1886 = vsub.s32 %v1883, %v1885
        %v1887 = vrot.slane %v1879, %v1886
        %v1889 = vunpack.c.l.s4 1934713408
        %v1890 = vunpack.c.0.s8 %v1889
        %v1891 = vlaneseq
        %v1892 = vshrl.u32 %v1891, 7
        %v1893 = vsub.s32 %v1890, %v1892
        %v1894 = vrot.slane %v1880, %v1893
        %v1895 = vcombine.high %v1887, 0.0
        %v1896 = vcombine.high %v1894, 0.0
        %1898 = vrot.lane.b32.xlu0 %v1895, 8
        %v1899 = vpop.permute.xlu0 %1898
        %1902 = vrot.lane.b32.xlu0 %v1894, 16
        %v1903 = vpop.permute.xlu0 %1902
        %1906 = vrot.lane.b32.xlu0 %v1896, 24
        %v1907 = vpop.permute.xlu0 %1906
        %vm1909 = vcmask 64512
        %v1910 = vsel %vm1909, %v1887, %v1899
        %vm1911 = vcmask 130048
        %v1912 = vsel %vm1911, %v1910, %v1903
        %vm1913 = vcmask 195584
        %v1914 = vsel %vm1913, %v1912, %v1907
        %v1915 = vpack.c.bf16 %v1914, %v1914
        %v1916 = vld [vmem:[#allocation2] sm:$0xff]
        %v1917 = vld [vmem:[#allocation2 + $0x8] sm:$0xff]
        %v1918 = vld [vmem:[%s259] sm:$0xff]
        %v1919 = vld [vmem:[%s259 + $0x8] sm:$0xff]
        %v1920 = vld [vmem:[%s259 + $0x10] sm:$0xff]
        %v1921 = vld [vmem:[%s259 + $0x18] sm:$0xff]
        %v1922 = vld [vmem:[%s259 + $0x20] sm:$0xff]
        %v1923 = vld [vmem:[%s259 + $0x28] sm:$0xff]
        %v1924 = vld [vmem:[%s259 + $0x30] sm:$0xff]
        %v1925 = vld [vmem:[%s259 + $0x38] sm:$0xff]
        %v1934 = vunpack.c.l.b16 %v1918
        %v1935 = vunpack.c.h.b16 %v1918
        %v1936 = vunpack.c.l.b16 %v1919
        %v1937 = vunpack.c.h.b16 %v1919
        %v1938 = vunpack.c.l.b16 %v1920
        %v1939 = vunpack.c.h.b16 %v1920
        %v1940 = vunpack.c.l.b16 %v1921
        %v1941 = vunpack.c.h.b16 %v1921
        %v1942 = vunpack.c.l.b16 %v1922
        %v1943 = vunpack.c.h.b16 %v1922
        %v1944 = vunpack.c.l.b16 %v1923
        %v1945 = vunpack.c.h.b16 %v1923
        %v1946 = vunpack.c.l.b16 %v1924
        %v1947 = vunpack.c.h.b16 %v1924
        %v1948 = vunpack.c.l.b16 %v1925
        %v1949 = vunpack.c.h.b16 %v1925
        %v1950 = vpack.c.b16 %v1938, %v1934
        %v1951 = vpack.c.b16 %v1939, %v1935
        %v1952 = vpack.c.b16 %v1940, %v1936
        %v1953 = vpack.c.b16 %v1941, %v1937
        %v1954 = vpack.c.b16 %v1946, %v1942
        %v1955 = vpack.c.b16 %v1947, %v1943
        %v1956 = vpack.c.b16 %v1948, %v1944
        %v1957 = vpack.c.b16 %v1949, %v1945
        %vm1966 = vcmask 261120
        %v1968 = vsel %vm1966, %v1915, 0
        %1970 = vmatprep.subr.bf16.mxu0 %v1951
        %1971 = vmatpush1.bf16.msra.mxu0 %v1950
        %1972 = vmatprep.subr.bf16.mxu0 %v1955
        %1973 = vmatpush1.bf16.msra.mxu0 %v1954
        %1974 = vmatprep.subr.bf16.mxu0 0
        %1975 = vmatpush1.bf16.msra.mxu0 0
        %1976 = vmatprep.subr.bf16.mxu0 0
        %1977 = vmatpush1.bf16.msra.mxu0 0
        %1978 = vmatprep.subr.bf16.mxu0 0
        %1979 = vmatpush1.bf16.msra.mxu0 0
        %1980 = vmatprep.subr.bf16.mxu0 0
        %1981 = vmatpush1.bf16.msra.mxu0 0
        %1982 = vmatprep.subr.bf16.mxu0 0
        %1983 = vmatpush1.bf16.msra.mxu0 0
        %1984 = vmatprep.subr.bf16.mxu0 0
        %1985 = vmatpush1.bf16.msra.mxu0 0
        %1986 = vmatprep.subr.bf16.mxu0 0
        %1987 = vmatpush1.bf16.msra.mxu0 0
        %1988 = vmatprep.subr.bf16.mxu0 0
        %1989 = vmatpush1.bf16.msra.mxu0 0
        %1990 = vmatprep.subr.bf16.mxu0 0
        %1991 = vmatpush1.bf16.msra.mxu0 0
        %1992 = vmatprep.subr.bf16.mxu0 0
        %1993 = vmatpush1.bf16.msra.mxu0 0
        %1994 = vmatprep.subr.bf16.mxu0 0
        %1995 = vmatpush1.bf16.msra.mxu0 0
        %1996 = vmatprep.subr.bf16.mxu0 0
        %1997 = vmatpush1.bf16.msra.mxu0 0
        %1998 = vmatprep.subr.bf16.mxu0 0
        %1999 = vmatpush1.bf16.msra.mxu0 0
        %2000 = vmatprep.subr.bf16.mxu0 0
        %2001 = vmatpush1.bf16.msra.mxu0 0
        %2002 = vmatprep.mubr.bf16.mxu0 0
        %2003 = vmatmul.mubr.bf16.gmra.mrb[0].mxu0 %v1968
        %v2004 = vpop.f32.mrb[0].mxu0
        %v2005 = vadd.f32 0.0, %v2004
        %v2006 = vpop.f32.mrb[0].mxu0
        %v2007 = vadd.f32 0.0, %v2006
        %v2008 = vpop.f32.mrb[0].mxu0
        %v2009 = vpop.f32.mrb[0].mxu0
        %2010 = vdwg.mxu0
        %2011 = vmatprep.subr.bf16.mxu0 %v1953
        %2012 = vmatpush1.bf16.msra.mxu0 %v1952
        %2013 = vmatprep.subr.bf16.mxu0 %v1957
        %2014 = vmatpush1.bf16.msra.mxu0 %v1956
        %2015 = vmatprep.subr.bf16.mxu0 0
        %2016 = vmatpush1.bf16.msra.mxu0 0
        %2017 = vmatprep.subr.bf16.mxu0 0
        %2018 = vmatpush1.bf16.msra.mxu0 0
        %2019 = vmatprep.subr.bf16.mxu0 0
        %2020 = vmatpush1.bf16.msra.mxu0 0
        %2021 = vmatprep.subr.bf16.mxu0 0
        %2022 = vmatpush1.bf16.msra.mxu0 0
        %2023 = vmatprep.subr.bf16.mxu0 0
        %2024 = vmatpush1.bf16.msra.mxu0 0
        %2025 = vmatprep.subr.bf16.mxu0 0
        %2026 = vmatpush1.bf16.msra.mxu0 0
        %2027 = vmatprep.subr.bf16.mxu0 0
        %2028 = vmatpush1.bf16.msra.mxu0 0
        %2029 = vmatprep.subr.bf16.mxu0 0
        %2030 = vmatpush1.bf16.msra.mxu0 0
        %2031 = vmatprep.subr.bf16.mxu0 0
        %2032 = vmatpush1.bf16.msra.mxu0 0
        %2033 = vmatprep.subr.bf16.mxu0 0
        %2034 = vmatpush1.bf16.msra.mxu0 0
        %2035 = vmatprep.subr.bf16.mxu0 0
        %2036 = vmatpush1.bf16.msra.mxu0 0
        %2037 = vmatprep.subr.bf16.mxu0 0
        %2038 = vmatpush1.bf16.msra.mxu0 0
        %2039 = vmatprep.subr.bf16.mxu0 0
        %2040 = vmatpush1.bf16.msra.mxu0 0
        %2041 = vmatprep.subr.bf16.mxu0 0
        %2042 = vmatpush1.bf16.msra.mxu0 0
        %2043 = vmatprep.mubr.bf16.mxu0 0
        %2044 = vmatmul.mubr.bf16.gmra.mrb[0].mxu0 %v1968
        %v2045 = vpop.f32.mrb[0].mxu0
        %v2046 = vadd.f32 0.0, %v2045
        %v2047 = vpop.f32.mrb[0].mxu0
        %v2048 = vadd.f32 0.0, %v2047
        %v2049 = vpop.f32.mrb[0].mxu0
        %v2050 = vpop.f32.mrb[0].mxu0
        %2051 = vdwg.mxu0
        %v2056 = vcombine.low %v2005, %v2007
        %v2057 = vcombine.low %v2046, %v2048
        %v2060 = vadd.f32 %v1916, %v2056
        %v2061 = vadd.f32 %v1917, %v2057
        %2062 = vst [vmem:[#allocation2] sm:$0xff] %v2060
        %2063 = vst [vmem:[#allocation2 + $0x8] sm:$0xff] %v2061
        %p2064 = scmp.eq.s32.totalorder %s24, 1
        // Predicated region
        $region45: #{tpu_custom_call.1} parent=35 // pred_check
          %p2065 = pneg %p2064
        $region46: #{tpu_custom_call.1} parent=35 // pred_check_branch
          %2067 = sbr.rel (%p2065) target = $region48
        $region47: #{tpu_custom_call.1} parent=35 // pred_region
          %v2068 = vld [vmem:[#allocation2] sm:$0xff]
          %v2069 = vld [vmem:[#allocation2 + $0x8] sm:$0xff]
          %v2070 = vld [vmem:[%s3] sm:$0xf]
          %v2072 = vlaneseq
          %v2073 = vshrl.u32 %v2072, 7
          %v2074 = vsub.s32 0, %v2073
          %v2075 = vrot.slane %v2070, %v2074
          %v2076 = vlaneseq
          %v2077 = vshrl.u32 %v2076, 7
          %v2078 = vsub.s32 1, %v2077
          %v2079 = vrot.slane %v2070, %v2078
          %v2080 = vlaneseq
          %v2081 = vshrl.u32 %v2080, 7
          %v2082 = vsub.s32 2, %v2081
          %v2083 = vrot.slane %v2070, %v2082
          %v2084 = vlaneseq
          %v2085 = vshrl.u32 %v2084, 7
          %v2086 = vsub.s32 3, %v2085
          %v2087 = vrot.slane %v2070, %v2086
          %v2088 = vcombine.low %v2075, %v2079
          %v2089 = vcombine.low %v2083, %v2087
          %v2092 = vadd.f32 %v2068, %v2088
          %v2093 = vadd.f32 %v2069, %v2089
          %2094 = vst [vmem:[%s244] sm:$0xff] %v2092
          %2095 = vst [vmem:[%s244 + $0x8] sm:$0xff] %v2093
        $region48: #{tpu_custom_call.1} parent=35 // pred_fallthru
          _
        %s2096 = sand.u32 %s135, 1
        %s2097 = scalar_lea.sflag [#allocation4], %s2096
        %s2098 = sand.u32 %s135, 1
        %s2099 = smul.addr %s2098, 16
        %s2100 = scalar_lea.vmem [#allocation6], %s2099
        // Predicated region
        $region49: #{tpu_custom_call.1} parent=35 // pred_check
          %p2101 = pneg %p145
        $region50: #{tpu_custom_call.1} parent=35 // pred_check_branch
          %2103 = sbr.rel (%p2101) target = $region52
        $region51: #{tpu_custom_call.1} parent=35 // pred_region
          %s2105 = ssub.s32 256, 256
          %2106 = vsyncadd %s2097, %s2105
          %s2107 = smul.addr %s23, 4
          %s2108 = smul.addr %s2107, 64
          %s2109 = scalar_lea.hbm %s4, %s2108
          %s2111 = sshll.u32 %s2100, 4
          %s2112 = int_to_ptr.vmem [resolvable:$true] %s2111
          %2114 = dma.vmem_to_hbm [thread:$0]  %s2112, 256, %s2109, %s2097
        $region52: #{tpu_custom_call.1} parent=35 // pred_fallthru
          _
      $region36: #{tpu_custom_call.1} parent=5 // pred_fallthru
        _
      %p2115 = scmp.le.s32.totalorder 2, %s14
      // Predicated region
      $region53: #{tpu_custom_call.1} parent=5 // pred_check
        %p2116 = pneg %p2115
      $region54: #{tpu_custom_call.1} parent=5 // pred_check_branch
        %2118 = sbr.rel (%p2116) target = $region56
      $region55: #{tpu_custom_call.1} parent=5 // pred_region
        %s2119 = ssub.s32 %s14, 2
        // Predicated region
        $region57: #{tpu_custom_call.1} parent=55 // pred_check
          %p2120 = pneg %p151
        $region58: #{tpu_custom_call.1} parent=55 // pred_check_branch
          %2122 = sbr.rel (%p2120) target = $region60
        $region59: #{tpu_custom_call.1} parent=55 // pred_region
          %s2123 = sand.u32 %s136, 1
          %s2124 = scalar_lea.sflag [#allocation4], %s2123
          %s2125 = sand.u32 %s136, 1
          %s2126 = smul.addr %s2125, 16
          %s2127 = scalar_lea.vmem [#allocation6], %s2126
          %2128 = dma.done %s2124, 256
        $region60: #{tpu_custom_call.1} parent=55 // pred_fallthru
          _
      $region56: #{tpu_custom_call.1} parent=5 // pred_fallthru
        _
    $region6: #{tpu_custom_call.1} parent=1 // loop_footer
      %s18 = sadd.s32 1, %s14
    $region7: #{tpu_custom_call.1} parent=1 // loop_footer_branch
      %13 = sbr.rel target = $region3
    $region8: #{tpu_custom_call.1} parent=1 // loop_exit
      _
    %2129 = vsyncpa [#allocation4], 1
    %s2130 = scalar_lea.sflag [#allocation4], 1
    %2131 = vsyncpa %s2130, 1
    %2132 = vsyncpa [#allocation5], 1
    %s2133 = scalar_lea.sflag [#allocation5], 1
    %2134 = vsyncpa %s2133, 1

</llo_original>
